<compile_context>
chip_gen: v5e
topology: v5e:2x2
jax: 0.10.0
libtpu: 0.0.40
codegen_flags: <defaults>
</compile_context>

<pallas_src>
import functools
import math

import jax
import jax.numpy as jnp
from jax.experimental import pallas as pl
from jax.experimental.pallas import tpu as pltpu


def _conv_kernel(x_ref, *rest, kw, p, row_tile, out_w, c_out_p):
    """One (batch, row-tile) grid step: full kw*kw reduction on the MXU.

    x_ref:    (1, row_tile, W+2p, C_in)        main row block
    halo_ref: (1, 2p,       W+2p, C_in)        bottom halo rows (only if p>0)
    w_ref:    (kw, kw, C_in, c_out_p)          full (padded) weights
    b_ref:    (1, c_out_p)                     padded bias row (f32)
    o_ref:    (1, row_tile, W, c_out_p)        lane-dense output block (f32)
    """
    if p > 0:
        halo_ref, w_ref, b_ref, o_ref = rest
        # (row_tile + 2p, W + 2p, C_in) halo window for this tile.
        xwin = jnp.concatenate([x_ref[0], halo_ref[0]], axis=0)
    else:
        w_ref, b_ref, o_ref = rest
        xwin = x_ref[0]

    m = row_tile * out_w
    acc = jnp.zeros((m, c_out_p), jnp.float32)
    for ih in range(kw):
        for iw in range(kw):
            patch = xwin[ih:ih + row_tile, iw:iw + out_w, :]
            patch = patch.reshape(m, patch.shape[-1])
            acc = acc + jnp.dot(patch, w_ref[ih, iw],
                                preferred_element_type=jnp.float32)
    out = acc + b_ref[...]                       # bias add in f32
    o_ref[0] = out.reshape(row_tile, out_w, c_out_p).astype(o_ref.dtype)


def _choose_row_tile(H, W, p, target_m=1024):
    """Rows per grid step: ~target_m output pixels, multiple of 2p."""
    th = max(1, min(H, target_m // max(W, 1)))
    if p > 0:
        th = max(2 * p, (th // (2 * p)) * (2 * p))
    return th


def conv2d_forward(x_nchw, w, b, *, row_tile=None, compute_dtype=jnp.float32):
    """Replicates F.conv2d(x, w, b, padding=(kw-1)//2) (float32 TPU path).

    x_nchw: (N, C_in, H, W)   w: (C_out, C_in, kw, kw)   b: (C_out,)
    returns: (N, C_out, H, W) float32
    """
    x = x_nchw.astype(jnp.float32)
    w = w.astype(jnp.float32)
    b = b.astype(jnp.float32)

    N, C_in, H, W = x.shape
    C_out, C_in_w, kh, kw = w.shape
    assert C_in_w == C_in and kh == kw and kw % 2 == 1
    p = (kw - 1) // 2

    th = row_tile if row_tile is not None else _choose_row_tile(H, W, p)
    if p > 0:
        assert th % (2 * p) == 0, "row tile must be a multiple of 2*pad"
    n_h = (H + th - 1) // th
    H2 = n_h * th                       # H padded up to a row-tile multiple
    Wp = W + 2 * p
    c_out_p = ((C_out + 127) // 128) * 128      # lane-dense output channels

    # NCHW -> NHWC and "same"-pad; extra zero rows at the bottom pad H up to
    # a row-tile multiple (their outputs are sliced off below).
    x_nhwc = jnp.transpose(x, (0, 2, 3, 1)).astype(compute_dtype)
    xp = jnp.pad(x_nhwc, ((0, 0), (p, p + (H2 - H)), (p, p), (0, 0)))

    # (C_out, C_in, kh, kw) -> (kh, kw, C_in, c_out_p), zero-padded channels.
    w_k = jnp.transpose(w, (2, 3, 1, 0)).astype(compute_dtype)
    w_k = jnp.pad(w_k, ((0, 0), (0, 0), (0, 0), (0, c_out_p - C_out)))
    b_row = jnp.pad(b, (0, c_out_p - C_out)).reshape(1, c_out_p)

    in_specs = [pl.BlockSpec((1, th, Wp, C_in), lambda n, h: (n, h, 0, 0))]
    inputs = [xp]
    if p > 0:
        halo_stride = th // (2 * p)     # bottom-halo block index per tile
        in_specs.append(
            pl.BlockSpec((1, 2 * p, Wp, C_in),
                         lambda n, h: (n, (h + 1) * halo_stride, 0, 0)))
        inputs.append(xp)
    in_specs += [
        pl.BlockSpec((kw, kw, C_in, c_out_p), lambda n, h: (0, 0, 0, 0)),
        pl.BlockSpec((1, c_out_p), lambda n, h: (0, 0)),
    ]
    inputs += [w_k, b_row]

    kernel = functools.partial(_conv_kernel, kw=kw, p=p, row_tile=th,
                               out_w=W, c_out_p=c_out_p)

    out = pl.pallas_call(
        kernel,
        out_shape=jax.ShapeDtypeStruct((N, H2, W, c_out_p), jnp.float32),
        grid_spec=pltpu.PrefetchScalarGridSpec(
            num_scalar_prefetch=0,
            grid=(N, n_h),
            in_specs=in_specs,
            out_specs=pl.BlockSpec((1, th, W, c_out_p),
                                   lambda n, h: (n, h, 0, 0)),
        ),
        compiler_params=pltpu.CompilerParams(
            dimension_semantics=("parallel", "parallel")),
    )(*inputs)

    out = out[:, :H, :, :C_out]                  # drop row/channel padding
    return jnp.transpose(out, (0, 3, 1, 2))      # NHWC -> NCHW


def init_conv2d_params(key, n_in, n_out, kw):
    """Matches the PyTorch __init__: w ~ N(0, 1/(n_in*kw^2)), b = 0."""
    std = 1.0 / math.sqrt(n_in * kw ** 2)
    w = jax.random.normal(key, (n_out, n_in, kw, kw), dtype=jnp.float32) * std
    b = jnp.zeros((n_out,), dtype=jnp.float32)
    return w, b


if __name__ == "__main__":
    key = jax.random.PRNGKey(0)
    k_x, k_w = jax.random.split(key)

    # Small shapes consistent with the module: NCHW input.
    N, C_in, H, W = 2, 4, 16, 16
    C_out, kw = 8, 3
    p = (kw - 1) // 2

    x = jax.random.normal(k_x, (N, C_in, H, W), dtype=jnp.float32)
    w, b = init_conv2d_params(k_w, C_in, C_out, kw)

    out = jax.jit(conv2d_forward)(x, w, b)
    out = jax.block_until_ready(out)

    # Reference: XLA's native conv (same semantics as F.conv2d, padding p).
    ref = jax.lax.conv_general_dilated(
        x, w,
        window_strides=(1, 1),
        padding=[(p, p), (p, p)],
        dimension_numbers=("NCHW", "OIHW", "NCHW"),
    ) + b.reshape(1, C_out, 1, 1)

    assert out.shape == (N, C_out, H, W)
    assert jnp.allclose(out, ref, rtol=1e-4, atol=1e-4)

    print("KERNEL_OK")
</pallas_src>

<mosaic_0001>
module attributes {stable_mosaic.version = 11 : i64} {
  func.func @_conv_kernel(%arg0: i32, %arg1: i32, %arg2: memref<1x16x18x4xf32, #tpu.memory_space<vmem>>, %arg3: memref<1x2x18x4xf32, #tpu.memory_space<vmem>>, %arg4: memref<3x3x4x128xf32, #tpu.memory_space<vmem>>, %arg5: memref<1x128xf32, #tpu.memory_space<vmem>>, %arg6: memref<1x16x16x128xf32, #tpu.memory_space<vmem>>) attributes {dimension_semantics = [#tpu.dimension_semantics<parallel>, #tpu.dimension_semantics<parallel>], iteration_bounds = array<i64: 2, 1>, scalar_prefetch = 0 : i64, scratch_operands = 0 : i64, tpu.core_type = #tpu.core_type<tc>, window_params = [{transform_indices = @transform_0, window_bounds = array<i64: 1, 16, 18, 4>}, {transform_indices = @transform_1, window_bounds = array<i64: 1, 2, 18, 4>}, {pipeline_mode = #tpu.pipeline_mode<synchronous>, transform_indices = @transform_2, window_bounds = array<i64: 3, 3, 4, 128>}, {pipeline_mode = #tpu.pipeline_mode<synchronous>, transform_indices = @transform_3, window_bounds = array<i64: 1, 128>}, {transform_indices = @transform_4, window_bounds = array<i64: 1, 16, 16, 128>}]} {
    %c0 = arith.constant 0 : index
    %c0_0 = arith.constant 0 : index
    %c0_1 = arith.constant 0 : index
    %c0_2 = arith.constant 0 : index
    %0 = vector.load %arg2[%c0, %c0_0, %c0_1, %c0_2] : memref<1x16x18x4xf32, #tpu.memory_space<vmem>>, vector<1x16x18x4xf32>
    %1 = vector.shape_cast %0 : vector<1x16x18x4xf32> to vector<16x18x4xf32>
    %c0_3 = arith.constant 0 : index
    %c0_4 = arith.constant 0 : index
    %c0_5 = arith.constant 0 : index
    %c0_6 = arith.constant 0 : index
    %2 = vector.load %arg3[%c0_3, %c0_4, %c0_5, %c0_6] : memref<1x2x18x4xf32, #tpu.memory_space<vmem>>, vector<1x2x18x4xf32>
    %3 = vector.shape_cast %2 : vector<1x2x18x4xf32> to vector<2x18x4xf32>
    %4 = tpu.concatenate %1, %3 in 0 : vector<16x18x4xf32>, vector<2x18x4xf32> -> vector<18x18x4xf32>
    %cst = arith.constant 0.000000e+00 : f32
    %5 = vector.broadcast %cst : f32 to vector<256x128xf32>
    %6 = vector.extract_strided_slice %4 {offsets = [0, 0, 0], sizes = [16, 16, 4], strides = [1, 1, 1]} : vector<18x18x4xf32> to vector<16x16x4xf32>
    %7 = vector.shape_cast %6 : vector<16x16x4xf32> to vector<256x4xf32>
    %c0_7 = arith.constant 0 : index
    %c0_8 = arith.constant 0 : index
    %c0_9 = arith.constant 0 : index
    %c0_10 = arith.constant 0 : index
    %8 = vector.load %arg4[%c0_7, %c0_8, %c0_9, %c0_10] : memref<3x3x4x128xf32, #tpu.memory_space<vmem>>, vector<1x1x4x128xf32>
    %9 = vector.shape_cast %8 : vector<1x1x4x128xf32> to vector<4x128xf32>
    %cst_11 = arith.constant dense<0.000000e+00> : vector<256x128xf32>
    %10 = tpu.matmul %7, %9, %cst_11 {dimension_numbers = #tpu.dot_dimension_numbers<[1], [0], [0], [1], [0, 0, 1, 1], [], []>} : vector<256x4xf32>, vector<4x128xf32>, vector<256x128xf32> -> vector<256x128xf32>
    %11 = arith.addf %5, %10 : vector<256x128xf32>
    %12 = vector.extract_strided_slice %4 {offsets = [0, 1, 0], sizes = [16, 16, 4], strides = [1, 1, 1]} : vector<18x18x4xf32> to vector<16x16x4xf32>
    %13 = vector.shape_cast %12 : vector<16x16x4xf32> to vector<256x4xf32>
    %c0_12 = arith.constant 0 : index
    %c1 = arith.constant 1 : index
    %c0_13 = arith.constant 0 : index
    %c0_14 = arith.constant 0 : index
    %14 = vector.load %arg4[%c0_12, %c1, %c0_13, %c0_14] : memref<3x3x4x128xf32, #tpu.memory_space<vmem>>, vector<1x1x4x128xf32>
    %15 = vector.shape_cast %14 : vector<1x1x4x128xf32> to vector<4x128xf32>
    %cst_15 = arith.constant dense<0.000000e+00> : vector<256x128xf32>
    %16 = tpu.matmul %13, %15, %cst_15 {dimension_numbers = #tpu.dot_dimension_numbers<[1], [0], [0], [1], [0, 0, 1, 1], [], []>} : vector<256x4xf32>, vector<4x128xf32>, vector<256x128xf32> -> vector<256x128xf32>
    %17 = arith.addf %11, %16 : vector<256x128xf32>
    %18 = vector.extract_strided_slice %4 {offsets = [0, 2, 0], sizes = [16, 16, 4], strides = [1, 1, 1]} : vector<18x18x4xf32> to vector<16x16x4xf32>
    %19 = vector.shape_cast %18 : vector<16x16x4xf32> to vector<256x4xf32>
    %c0_16 = arith.constant 0 : index
    %c2 = arith.constant 2 : index
    %c0_17 = arith.constant 0 : index
    %c0_18 = arith.constant 0 : index
    %20 = vector.load %arg4[%c0_16, %c2, %c0_17, %c0_18] : memref<3x3x4x128xf32, #tpu.memory_space<vmem>>, vector<1x1x4x128xf32>
    %21 = vector.shape_cast %20 : vector<1x1x4x128xf32> to vector<4x128xf32>
    %cst_19 = arith.constant dense<0.000000e+00> : vector<256x128xf32>
    %22 = tpu.matmul %19, %21, %cst_19 {dimension_numbers = #tpu.dot_dimension_numbers<[1], [0], [0], [1], [0, 0, 1, 1], [], []>} : vector<256x4xf32>, vector<4x128xf32>, vector<256x128xf32> -> vector<256x128xf32>
    %23 = arith.addf %17, %22 : vector<256x128xf32>
    %24 = vector.extract_strided_slice %4 {offsets = [1, 0, 0], sizes = [16, 16, 4], strides = [1, 1, 1]} : vector<18x18x4xf32> to vector<16x16x4xf32>
    %25 = vector.shape_cast %24 : vector<16x16x4xf32> to vector<256x4xf32>
    %c1_20 = arith.constant 1 : index
    %c0_21 = arith.constant 0 : index
    %c0_22 = arith.constant 0 : index
    %c0_23 = arith.constant 0 : index
    %26 = vector.load %arg4[%c1_20, %c0_21, %c0_22, %c0_23] : memref<3x3x4x128xf32, #tpu.memory_space<vmem>>, vector<1x1x4x128xf32>
    %27 = vector.shape_cast %26 : vector<1x1x4x128xf32> to vector<4x128xf32>
    %cst_24 = arith.constant dense<0.000000e+00> : vector<256x128xf32>
    %28 = tpu.matmul %25, %27, %cst_24 {dimension_numbers = #tpu.dot_dimension_numbers<[1], [0], [0], [1], [0, 0, 1, 1], [], []>} : vector<256x4xf32>, vector<4x128xf32>, vector<256x128xf32> -> vector<256x128xf32>
    %29 = arith.addf %23, %28 : vector<256x128xf32>
    %30 = vector.extract_strided_slice %4 {offsets = [1, 1, 0], sizes = [16, 16, 4], strides = [1, 1, 1]} : vector<18x18x4xf32> to vector<16x16x4xf32>
    %31 = vector.shape_cast %30 : vector<16x16x4xf32> to vector<256x4xf32>
    %c1_25 = arith.constant 1 : index
    %c1_26 = arith.constant 1 : index
    %c0_27 = arith.constant 0 : index
    %c0_28 = arith.constant 0 : index
    %32 = vector.load %arg4[%c1_25, %c1_26, %c0_27, %c0_28] : memref<3x3x4x128xf32, #tpu.memory_space<vmem>>, vector<1x1x4x128xf32>
    %33 = vector.shape_cast %32 : vector<1x1x4x128xf32> to vector<4x128xf32>
    %cst_29 = arith.constant dense<0.000000e+00> : vector<256x128xf32>
    %34 = tpu.matmul %31, %33, %cst_29 {dimension_numbers = #tpu.dot_dimension_numbers<[1], [0], [0], [1], [0, 0, 1, 1], [], []>} : vector<256x4xf32>, vector<4x128xf32>, vector<256x128xf32> -> vector<256x128xf32>
    %35 = arith.addf %29, %34 : vector<256x128xf32>
    %36 = vector.extract_strided_slice %4 {offsets = [1, 2, 0], sizes = [16, 16, 4], strides = [1, 1, 1]} : vector<18x18x4xf32> to vector<16x16x4xf32>
    %37 = vector.shape_cast %36 : vector<16x16x4xf32> to vector<256x4xf32>
    %c1_30 = arith.constant 1 : index
    %c2_31 = arith.constant 2 : index
    %c0_32 = arith.constant 0 : index
    %c0_33 = arith.constant 0 : index
    %38 = vector.load %arg4[%c1_30, %c2_31, %c0_32, %c0_33] : memref<3x3x4x128xf32, #tpu.memory_space<vmem>>, vector<1x1x4x128xf32>
    %39 = vector.shape_cast %38 : vector<1x1x4x128xf32> to vector<4x128xf32>
    %cst_34 = arith.constant dense<0.000000e+00> : vector<256x128xf32>
    %40 = tpu.matmul %37, %39, %cst_34 {dimension_numbers = #tpu.dot_dimension_numbers<[1], [0], [0], [1], [0, 0, 1, 1], [], []>} : vector<256x4xf32>, vector<4x128xf32>, vector<256x128xf32> -> vector<256x128xf32>
    %41 = arith.addf %35, %40 : vector<256x128xf32>
    %42 = vector.extract_strided_slice %4 {offsets = [2, 0, 0], sizes = [16, 16, 4], strides = [1, 1, 1]} : vector<18x18x4xf32> to vector<16x16x4xf32>
    %43 = vector.shape_cast %42 : vector<16x16x4xf32> to vector<256x4xf32>
    %c2_35 = arith.constant 2 : index
    %c0_36 = arith.constant 0 : index
    %c0_37 = arith.constant 0 : index
    %c0_38 = arith.constant 0 : index
    %44 = vector.load %arg4[%c2_35, %c0_36, %c0_37, %c0_38] : memref<3x3x4x128xf32, #tpu.memory_space<vmem>>, vector<1x1x4x128xf32>
    %45 = vector.shape_cast %44 : vector<1x1x4x128xf32> to vector<4x128xf32>
    %cst_39 = arith.constant dense<0.000000e+00> : vector<256x128xf32>
    %46 = tpu.matmul %43, %45, %cst_39 {dimension_numbers = #tpu.dot_dimension_numbers<[1], [0], [0], [1], [0, 0, 1, 1], [], []>} : vector<256x4xf32>, vector<4x128xf32>, vector<256x128xf32> -> vector<256x128xf32>
    %47 = arith.addf %41, %46 : vector<256x128xf32>
    %48 = vector.extract_strided_slice %4 {offsets = [2, 1, 0], sizes = [16, 16, 4], strides = [1, 1, 1]} : vector<18x18x4xf32> to vector<16x16x4xf32>
    %49 = vector.shape_cast %48 : vector<16x16x4xf32> to vector<256x4xf32>
    %c2_40 = arith.constant 2 : index
    %c1_41 = arith.constant 1 : index
    %c0_42 = arith.constant 0 : index
    %c0_43 = arith.constant 0 : index
    %50 = vector.load %arg4[%c2_40, %c1_41, %c0_42, %c0_43] : memref<3x3x4x128xf32, #tpu.memory_space<vmem>>, vector<1x1x4x128xf32>
    %51 = vector.shape_cast %50 : vector<1x1x4x128xf32> to vector<4x128xf32>
    %cst_44 = arith.constant dense<0.000000e+00> : vector<256x128xf32>
    %52 = tpu.matmul %49, %51, %cst_44 {dimension_numbers = #tpu.dot_dimension_numbers<[1], [0], [0], [1], [0, 0, 1, 1], [], []>} : vector<256x4xf32>, vector<4x128xf32>, vector<256x128xf32> -> vector<256x128xf32>
    %53 = arith.addf %47, %52 : vector<256x128xf32>
    %54 = vector.extract_strided_slice %4 {offsets = [2, 2, 0], sizes = [16, 16, 4], strides = [1, 1, 1]} : vector<18x18x4xf32> to vector<16x16x4xf32>
    %55 = vector.shape_cast %54 : vector<16x16x4xf32> to vector<256x4xf32>
    %c2_45 = arith.constant 2 : index
    %c2_46 = arith.constant 2 : index
    %c0_47 = arith.constant 0 : index
    %c0_48 = arith.constant 0 : index
    %56 = vector.load %arg4[%c2_45, %c2_46, %c0_47, %c0_48] : memref<3x3x4x128xf32, #tpu.memory_space<vmem>>, vector<1x1x4x128xf32>
    %57 = vector.shape_cast %56 : vector<1x1x4x128xf32> to vector<4x128xf32>
    %cst_49 = arith.constant dense<0.000000e+00> : vector<256x128xf32>
    %58 = tpu.matmul %55, %57, %cst_49 {dimension_numbers = #tpu.dot_dimension_numbers<[1], [0], [0], [1], [0, 0, 1, 1], [], []>} : vector<256x4xf32>, vector<4x128xf32>, vector<256x128xf32> -> vector<256x128xf32>
    %59 = arith.addf %53, %58 : vector<256x128xf32>
    %c0_50 = arith.constant 0 : index
    %c0_51 = arith.constant 0 : index
    %60 = vector.load %arg5[%c0_50, %c0_51] : memref<1x128xf32, #tpu.memory_space<vmem>>, vector<1x128xf32>
    %61 = vector.broadcast %60 : vector<1x128xf32> to vector<256x128xf32>
    %62 = arith.addf %59, %61 : vector<256x128xf32>
    %63 = vector.shape_cast %62 : vector<256x128xf32> to vector<16x16x128xf32>
    %c0_52 = arith.constant 0 : index
    %c0_53 = arith.constant 0 : index
    %c0_54 = arith.constant 0 : index
    %c0_55 = arith.constant 0 : index
    %64 = vector.load %arg6[%c0_52, %c0_53, %c0_54, %c0_55] : memref<1x16x16x128xf32, #tpu.memory_space<vmem>>, vector<1x16x16x128xf32>
    %65 = vector.shape_cast %64 : vector<1x16x16x128xf32> to vector<16x16x128xf32>
    %66 = vector.shape_cast %63 : vector<16x16x128xf32> to vector<1x16x16x128xf32>
    tpu.vector_store %arg6[%c0_52, %c0_53, %c0_54, %c0_55], %66 {strides = array<i32>} : memref<1x16x16x128xf32, #tpu.memory_space<vmem>>, vector<1x16x16x128xf32>,
    return
  }
  func.func @transform_0(%arg0: i32, %arg1: i32) -> (i32, i32, i32, i32) {
    %c0_i32 = arith.constant 0 : i32
    %c0_i32_0 = arith.constant 0 : i32
    %c0_i32_1 = arith.constant 0 : i32
    return %arg0, %arg1, %c0_i32, %c0_i32_0 : i32, i32, i32, i32
  }
  func.func @transform_1(%arg0: i32, %arg1: i32) -> (i32, i32, i32, i32) {
    %c1_i32 = arith.constant 1 : i32
    %0 = arith.addi %arg1, %c1_i32 : i32
    %c8_i32 = arith.constant 8 : i32
    %1 = arith.muli %0, %c8_i32 : i32
    %c0_i32 = arith.constant 0 : i32
    %c0_i32_0 = arith.constant 0 : i32
    %c0_i32_1 = arith.constant 0 : i32
    return %arg0, %1, %c0_i32, %c0_i32_0 : i32, i32, i32, i32
  }
  func.func @transform_2(%arg0: i32, %arg1: i32) -> (i32, i32, i32, i32) {
    %c0_i32 = arith.constant 0 : i32
    %c0_i32_0 = arith.constant 0 : i32
    %c0_i32_1 = arith.constant 0 : i32
    %c0_i32_2 = arith.constant 0 : i32
    %c0_i32_3 = arith.constant 0 : i32
    return %c0_i32, %c0_i32_0, %c0_i32_1, %c0_i32_2 : i32, i32, i32, i32
  }
  func.func @transform_3(%arg0: i32, %arg1: i32) -> (i32, i32) {
    %c0_i32 = arith.constant 0 : i32
    %c0_i32_0 = arith.constant 0 : i32
    %c0_i32_1 = arith.constant 0 : i32
    return %c0_i32, %c0_i32_0 : i32, i32
  }
  func.func @transform_4(%arg0: i32, %arg1: i32) -> (i32, i32, i32, i32) {
    %c0_i32 = arith.constant 0 : i32
    %c0_i32_0 = arith.constant 0 : i32
    %c0_i32_1 = arith.constant 0 : i32
    return %arg0, %arg1, %c0_i32, %c0_i32_0 : i32, i32, i32, i32
  }
}

</mosaic_0001>

<llo_original>
// kernel: conv2d_forward.1
$region0: #{conv2d_forward.1}
  #allocation0 [shape = 'u32[]', space=smem, size = 0x4, offset = 0x4, fixed_abs, tag = 'smem constant byte address 0x4 - core index']
  #allocation1 [shape = 'u32[72,128]{1,0:T(1,128)}', space=vmem, size = 0x9000, scoped, tag = 'internal scratch']
  %s0 = inlined_call_operand.vmem [shape: f32[2,18,18,4], index: 0, kind: input, shape index: {}, may-alias: {0,1}]
  %s1 = inlined_call_operand.vmem [shape: f32[2,18,18,4], index: 1, kind: input, shape index: {}, may-alias: {0,1}]
  %s2 = inlined_call_operand.vmem [shape: f32[3,3,4,128], index: 2, kind: input, shape index: {}]
  %s3 = inlined_call_operand.vmem [shape: f32[1,128], index: 3, kind: input, shape index: {}]
  %s4 = inlined_call_operand.vmem [shape: f32[2,16,16,128], index: 4, kind: output, shape index: {}]
  %s5 = sld [smem:[#allocation0]]
  $region49: #{conv2d_forward.1} parent=0
    _
  %s7 = ssub.s32 1, %s5
  %s8 = scalar_select 0, %s7, %s5
  loop: start=0, step=1, limit=4
  $region2: #{conv2d_forward.1} parent=0 // loop_pre_header
    _
  $region3: #{conv2d_forward.1} parent=0 // loop_header
    %s10 = sphi 0, %s14
    %p11 = scmp.ge.s32.totalorder %s10, 4
    %s17 = sphi 0, %s29
    %s18 = sphi 0, %s25
    %s19 = sphi 0, %s17
    %s20 = sphi 0, %s18
    %s21 = sphi 0, %s19
    %s22 = sphi 0, %s20
    %s34 = sphi 0, %s36
    %s37 = sphi 0, %s34
    %s38 = sphi 0, %s37
    %s54 = sphi 0, %s38
    %s66 = sphi 0, %s68
    %s69 = sphi 0, %s66
    %s70 = sphi 0, %s69
    %s86 = sphi 0, %s70
    %s90 = sphi 0, %s90
    %s92 = sphi 0, %s90
    %s93 = sphi 0, %s92
    %s107 = sphi 0, %s93
    %s111 = sphi 0, %s111
    %s113 = sphi 0, %s111
    %s114 = sphi 0, %s113
    %s128 = sphi 0, %s114
    %s136 = sphi 0, %s138
    %s139 = sphi 0, %s136
    %s140 = sphi 0, %s139
    %s156 = sphi 0, %s140
  $region4: #{conv2d_forward.1} parent=0 // loop_header_branch
    %13 = sbr.rel (%p11) target = $region8
  $region5: #{conv2d_forward.1} parent=0 // loop_body
    %s15 = ssub.s32 %s10, 1
    %s16 = ssub.s32 %s10, 2
    %s23 = sadd.s32 1, %s18
    %p24 = scmp.ge.s32.totalorder %s23, 1
    %s25 = scalar_select %p24, 0, %s23
    %s26 = sadd.s32 1, %s17
    %s27 = scalar_select %p24, %s26, %s17
    %p28 = scmp.ge.s32.totalorder %s27, 2
    %s29 = scalar_select %p28, 0, %s27
    %s30 = ssub.s32 %s17, %s29
    %s31 = ssub.s32 %s18, %s25
    %s32 = sor.u32 %s30, %s31
    %p33 = scmp.eq.s32.totalorder %s32, 0
    %s35 = sadd.s32 %s34, 1
    %s36 = scalar_select %p33, %s34, %s35
    %p39 = pneg %p33
    %p40 = scmp.eq.s32.totalorder %s10, 1
    %p41 = por %p39, %p40
    %p42 = scmp.ne.s32.totalorder %s34, %s37
    %p43 = scmp.eq.s32.totalorder %s10, 0
    %p44 = por %p42, %p43
    %p45 = scmp.ne.s32.totalorder %s34, %s37
    %p46 = scmp.eq.s32.totalorder %s15, 1
    %p47 = por %p45, %p46
    %p48 = scmp.ne.s32.totalorder %s37, %s38
    %p49 = scmp.eq.s32.totalorder %s15, 0
    %p50 = por %p48, %p49
    %p51 = scmp.ne.s32.totalorder %s37, %s38
    %p52 = scmp.eq.s32.totalorder %s16, 1
    %p53 = por %p51, %p52
    %p55 = scmp.ne.s32.totalorder %s38, %s54
    %p56 = scmp.eq.s32.totalorder %s16, 0
    %p57 = por %p55, %p56
    %s58 = sadd.s32 %s18, 1
    %s59 = smul.u32 %s58, 8
    %s60 = sadd.s32 %s25, 1
    %s61 = smul.u32 %s60, 8
    %s62 = ssub.s32 %s17, %s29
    %s63 = ssub.s32 %s59, %s61
    %s64 = sor.u32 %s62, %s63
    %p65 = scmp.eq.s32.totalorder %s64, 0
    %s67 = sadd.s32 %s66, 1
    %s68 = scalar_select %p65, %s66, %s67
    %p71 = pneg %p65
    %p72 = scmp.eq.s32.totalorder %s10, 1
    %p73 = por %p71, %p72
    %p74 = scmp.ne.s32.totalorder %s66, %s69
    %p75 = scmp.eq.s32.totalorder %s10, 0
    %p76 = por %p74, %p75
    %p77 = scmp.ne.s32.totalorder %s66, %s69
    %p78 = scmp.eq.s32.totalorder %s15, 1
    %p79 = por %p77, %p78
    %p80 = scmp.ne.s32.totalorder %s69, %s70
    %p81 = scmp.eq.s32.totalorder %s15, 0
    %p82 = por %p80, %p81
    %p83 = scmp.ne.s32.totalorder %s69, %s70
    %p84 = scmp.eq.s32.totalorder %s16, 1
    %p85 = por %p83, %p84
    %p87 = scmp.ne.s32.totalorder %s70, %s86
    %p88 = scmp.eq.s32.totalorder %s16, 0
    %p89 = por %p87, %p88
    %s91 = sadd.s32 %s90, 1
    %p94 = scmp.eq.s32.totalorder %s10, 1
    %p95 = scmp.ne.s32.totalorder %s90, %s92
    %p96 = scmp.eq.s32.totalorder %s10, 0
    %p97 = por %p95, %p96
    %p98 = scmp.ne.s32.totalorder %s90, %s92
    %p99 = scmp.eq.s32.totalorder %s15, 1
    %p100 = por %p98, %p99
    %p101 = scmp.ne.s32.totalorder %s92, %s93
    %p102 = scmp.eq.s32.totalorder %s15, 0
    %p103 = por %p101, %p102
    %p104 = scmp.ne.s32.totalorder %s92, %s93
    %p105 = scmp.eq.s32.totalorder %s16, 1
    %p106 = por %p104, %p105
    %p108 = scmp.ne.s32.totalorder %s93, %s107
    %p109 = scmp.eq.s32.totalorder %s16, 0
    %p110 = por %p108, %p109
    %s112 = sadd.s32 %s111, 1
    %p115 = scmp.eq.s32.totalorder %s10, 1
    %p116 = scmp.ne.s32.totalorder %s111, %s113
    %p117 = scmp.eq.s32.totalorder %s10, 0
    %p118 = por %p116, %p117
    %p119 = scmp.ne.s32.totalorder %s111, %s113
    %p120 = scmp.eq.s32.totalorder %s15, 1
    %p121 = por %p119, %p120
    %p122 = scmp.ne.s32.totalorder %s113, %s114
    %p123 = scmp.eq.s32.totalorder %s15, 0
    %p124 = por %p122, %p123
    %p125 = scmp.ne.s32.totalorder %s113, %s114
    %p126 = scmp.eq.s32.totalorder %s16, 1
    %p127 = por %p125, %p126
    %p129 = scmp.ne.s32.totalorder %s114, %s128
    %p130 = scmp.eq.s32.totalorder %s16, 0
    %p131 = por %p129, %p130
    %s132 = ssub.s32 %s17, %s29
    %s133 = ssub.s32 %s18, %s25
    %s134 = sor.u32 %s132, %s133
    %p135 = scmp.eq.s32.totalorder %s134, 0
    %s137 = sadd.s32 %s136, 1
    %s138 = scalar_select %p135, %s136, %s137
    %p141 = pneg %p135
    %p142 = scmp.eq.s32.totalorder %s10, 1
    %p143 = por %p141, %p142
    %p144 = scmp.ne.s32.totalorder %s136, %s139
    %p145 = scmp.eq.s32.totalorder %s10, 0
    %p146 = por %p144, %p145
    %p147 = scmp.ne.s32.totalorder %s136, %s139
    %p148 = scmp.eq.s32.totalorder %s15, 1
    %p149 = por %p147, %p148
    %p150 = scmp.ne.s32.totalorder %s139, %s140
    %p151 = scmp.eq.s32.totalorder %s15, 0
    %p152 = por %p150, %p151
    %p153 = scmp.ne.s32.totalorder %s139, %s140
    %p154 = scmp.eq.s32.totalorder %s16, 1
    %p155 = por %p153, %p154
    %p157 = scmp.ne.s32.totalorder %s140, %s156
    %p158 = scmp.eq.s32.totalorder %s16, 0
    %p159 = por %p157, %p158
    %p160 = scmp.le.s32.totalorder 1, %s10
    %p161 = scmp.lt.s32.totalorder %s10, 3
    %p162 = pnand %p160, %p161
    %p163 = pneg %p162
    // Predicated region
    $region9: #{conv2d_forward.1} parent=5 // pred_check
      _
    $region10: #{conv2d_forward.1} parent=5 // pred_check_branch
      %165 = sbr.rel (%p162) target = $region12
    $region11: #{conv2d_forward.1} parent=5 // pred_region
      %s166 = ssub.s32 %s10, 1
      // Predicated region
      $region13: #{conv2d_forward.1} parent=11 // pred_check
        %p167 = pneg %p103
      $region14: #{conv2d_forward.1} parent=11 // pred_check_branch
        %169 = sbr.rel (%p167) target = $region16
      $region15: #{conv2d_forward.1} parent=11 // pred_region
        _
      $region16: #{conv2d_forward.1} parent=11 // pred_fallthru
        _
      // Predicated region
      $region17: #{conv2d_forward.1} parent=11 // pred_check
        %p170 = pneg %p124
      $region18: #{conv2d_forward.1} parent=11 // pred_check_branch
        %172 = sbr.rel (%p170) target = $region20
      $region19: #{conv2d_forward.1} parent=11 // pred_region
        _
      $region20: #{conv2d_forward.1} parent=11 // pred_fallthru
        _
    $region12: #{conv2d_forward.1} parent=5 // pred_fallthru
      _
    %p173 = scmp.lt.s32.totalorder %s10, 2
    // Predicated region
    $region21: #{conv2d_forward.1} parent=5 // pred_check
      %p174 = pneg %p173
    $region22: #{conv2d_forward.1} parent=5 // pred_check_branch
      %176 = sbr.rel (%p174) target = $region24
    $region23: #{conv2d_forward.1} parent=5 // pred_region
      // Predicated region
      $region25: #{conv2d_forward.1} parent=23 // pred_check
        %p177 = pneg %p44
      $region26: #{conv2d_forward.1} parent=23 // pred_check_branch
        %179 = sbr.rel (%p177) target = $region28
      $region27: #{conv2d_forward.1} parent=23 // pred_region
        %s180 = smul.u32 16, %s18
        %s181 = ssub.s32 18, %s180
        %p182 = scmp.lt.s32.totalorder %s181, 16
        %s183 = scalar_select %p182, %s181, 16
        %s184 = smul.u32 8, %s183
        %s185 = smul.u32 %s184, 3
        %p186 = scmp.lt.s32.totalorder %s17, 1
        %s187 = scalar_select %p186, %s17, 1
        %p188 = scmp.lt.s32.totalorder %s180, 17
        %s189 = scalar_select %p188, %s180, 17
        %s190 = smul.addr %s189, 3
        %s191 = smul.addr %s187, 54
        %s192 = sadd.s32 %s190, %s191
        %s193 = smul.addr %s192, 8
        %s194 = scalar_lea.vmem %s0, %s193
        %s195 = smul.u32 16, %s18
        %s196 = ssub.s32 18, %s195
        %p197 = scmp.lt.s32.totalorder %s196, 16
        %s198 = scalar_select %p197, %s196, 16
        %s199 = smul.u32 8, %s198
        %s200 = smul.u32 %s199, 3
      $region28: #{conv2d_forward.1} parent=23 // pred_fallthru
        _
      // Predicated region
      $region29: #{conv2d_forward.1} parent=23 // pred_check
        %p201 = pneg %p76
      $region30: #{conv2d_forward.1} parent=23 // pred_check_branch
        %203 = sbr.rel (%p201) target = $region32
      $region31: #{conv2d_forward.1} parent=23 // pred_region
        %s204 = sadd.s32 %s18, 1
        %s205 = smul.u32 %s204, 8
        %s206 = smul.u32 2, %s205
        %p207 = scmp.lt.s32.totalorder %s17, 1
        %s208 = scalar_select %p207, %s17, 1
        %p209 = scmp.lt.s32.totalorder %s206, 17
        %s210 = scalar_select %p209, %s206, 17
        %s211 = smul.addr %s210, 3
        %s212 = smul.addr %s208, 54
        %s213 = sadd.s32 %s211, %s212
        %s214 = smul.addr %s213, 8
        %s215 = scalar_lea.vmem %s1, %s214
        %s216 = sadd.s32 %s18, 1
        %s217 = smul.u32 %s216, 8
        %s218 = smul.u32 2, %s217
      $region32: #{conv2d_forward.1} parent=23 // pred_fallthru
        _
    $region24: #{conv2d_forward.1} parent=5 // pred_fallthru
      _
    %p219 = scmp.le.s32.totalorder 1, %s10
    %p220 = scmp.lt.s32.totalorder %s10, 3
    %p221 = pnand %p219, %p220
    %p222 = pneg %p221
    // Predicated region
    $region33: #{conv2d_forward.1} parent=5 // pred_check
      _
    $region34: #{conv2d_forward.1} parent=5 // pred_check_branch
      %224 = sbr.rel (%p221) target = $region36
    $region35: #{conv2d_forward.1} parent=5 // pred_region
      %s225 = ssub.s32 %s10, 1
      %s226 = smul.u32 16, %s20
      %s227 = ssub.s32 18, %s226
      %p228 = scmp.lt.s32.totalorder %s227, 16
      %s229 = scalar_select %p228, %s227, 16
      %s230 = smul.u32 8, %s229
      %s231 = smul.u32 %s230, 3
      %p232 = scmp.lt.s32.totalorder %s19, 1
      %s233 = scalar_select %p232, %s19, 1
      %p234 = scmp.lt.s32.totalorder %s226, 17
      %s235 = scalar_select %p234, %s226, 17
      %s236 = smul.addr %s235, 3
      %s237 = smul.addr %s233, 54
      %s238 = sadd.s32 %s236, %s237
      %s239 = smul.addr %s238, 8
      %s240 = scalar_lea.vmem %s0, %s239
      %p241 = pneg %p50
      %p242 = pneg %p47
      %s243 = sadd.s32 %s20, 1
      %s244 = smul.u32 %s243, 8
      %s245 = smul.u32 2, %s244
      %p246 = scmp.lt.s32.totalorder %s19, 1
      %s247 = scalar_select %p246, %s19, 1
      %p248 = scmp.lt.s32.totalorder %s245, 17
      %s249 = scalar_select %p248, %s245, 17
      %s250 = smul.addr %s249, 3
      %s251 = smul.addr %s247, 54
      %s252 = sadd.s32 %s250, %s251
      %s253 = smul.addr %s252, 8
      %s254 = scalar_lea.vmem %s1, %s253
      %p255 = pneg %p82
      %p256 = pneg %p79
      %p257 = pneg %p103
      %p258 = pneg %p100
      %p259 = pneg %p124
      %p260 = pneg %p121
      %p261 = pneg %p152
      %p262 = pneg %p149
      %s263 = smul.u32 16, %s20
      %p264 = scmp.lt.s32.totalorder %s19, 1
      %s265 = scalar_select %p264, %s19, 1
      %p266 = scmp.lt.s32.totalorder %s263, 15
      %s267 = scalar_select %p266, %s263, 15
      %s268 = smul.addr %s267, 2
      %s269 = smul.addr %s265, 32
      %s270 = sadd.s32 %s268, %s269
      %s271 = smul.addr %s270, 8
      %s272 = scalar_lea.vmem %s4, %s271
      %s273 = smul.u32 16, %s20
      %s274 = ssub.s32 18, %s273
      %p275 = scmp.lt.s32.totalorder %s274, 16
      %s276 = scalar_select %p275, %s274, 16
      %s277 = smul.u32 8, %s276
      %s278 = smul.u32 %s277, 3
      %p279 = scmp.lt.s32.totalorder %s19, 1
      %s280 = scalar_select %p279, %s19, 1
      %p281 = scmp.lt.s32.totalorder %s273, 17
      %s282 = scalar_select %p281, %s273, 17
      %s283 = smul.addr %s282, 3
      %s284 = smul.addr %s280, 54
      %s285 = sadd.s32 %s283, %s284
      %s286 = smul.addr %s285, 8
      %s287 = scalar_lea.vmem %s0, %s286
      %s288 = smul.u32 16, %s20
      %s289 = ssub.s32 18, %s288
      %p290 = scmp.lt.s32.totalorder %s289, 16
      %s291 = scalar_select %p290, %s289, 16
      %s292 = smul.u32 8, %s291
      %s293 = smul.u32 %s292, 3
      %s294 = sadd.s32 %s20, 1
      %s295 = smul.u32 %s294, 8
      %s296 = smul.u32 2, %s295
      %p297 = scmp.lt.s32.totalorder %s19, 1
      %s298 = scalar_select %p297, %s19, 1
      %p299 = scmp.lt.s32.totalorder %s296, 17
      %s300 = scalar_select %p299, %s296, 17
      %s301 = smul.addr %s300, 3
      %s302 = smul.addr %s298, 54
      %s303 = sadd.s32 %s301, %s302
      %s304 = smul.addr %s303, 8
      %s305 = scalar_lea.vmem %s1, %s304
      %s306 = sadd.s32 %s20, 1
      %s307 = smul.u32 %s306, 8
      %s308 = smul.u32 2, %s307
      %s309 = smul.u32 16, %s20
      %p310 = scmp.lt.s32.totalorder %s19, 1
      %s311 = scalar_select %p310, %s19, 1
      %p312 = scmp.lt.s32.totalorder %s309, 15
      %s313 = scalar_select %p312, %s309, 15
      %s314 = smul.addr %s313, 2
      %s315 = smul.addr %s311, 32
      %s316 = sadd.s32 %s314, %s315
      %s317 = smul.addr %s316, 8
      %s318 = scalar_lea.vmem %s4, %s317
      %s319 = smul.u32 16, %s20
      %v320 = vld [vmem:[%s287] sm:$0xff]
      %v321 = vld [vmem:[%s287 + $0x8] sm:$0xff]
      %v322 = vld [vmem:[%s287 + $0x10] sm:$0x3]
      %v323 = vld [vmem:[%s287 + $0x18] sm:$0xff]
      %v324 = vld [vmem:[%s287 + $0x20] sm:$0xff]
      %v325 = vld [vmem:[%s287 + $0x28] sm:$0x3]
      %v326 = vld [vmem:[%s287 + $0x30] sm:$0xff]
      %v327 = vld [vmem:[%s287 + $0x38] sm:$0xff]
      %v328 = vld [vmem:[%s287 + $0x40] sm:$0x3]
      %v329 = vld [vmem:[%s287 + $0x48] sm:$0xff]
      %v330 = vld [vmem:[%s287 + $0x50] sm:$0xff]
      %v331 = vld [vmem:[%s287 + $0x58] sm:$0x3]
      %v332 = vld [vmem:[%s287 + $0x60] sm:$0xff]
      %v333 = vld [vmem:[%s287 + $0x68] sm:$0xff]
      %v334 = vld [vmem:[%s287 + $0x70] sm:$0x3]
      %v335 = vld [vmem:[%s287 + $0x78] sm:$0xff]
      %v336 = vld [vmem:[%s287 + $0x80] sm:$0xff]
      %v337 = vld [vmem:[%s287 + $0x88] sm:$0x3]
      %v338 = vld [vmem:[%s287 + $0x90] sm:$0xff]
      %v339 = vld [vmem:[%s287 + $0x98] sm:$0xff]
      %v340 = vld [vmem:[%s287 + $0xa0] sm:$0x3]
      %v341 = vld [vmem:[%s287 + $0xa8] sm:$0xff]
      %v342 = vld [vmem:[%s287 + $0xb0] sm:$0xff]
      %v343 = vld [vmem:[%s287 + $0xb8] sm:$0x3]
      %v344 = vld [vmem:[%s287 + $0xc0] sm:$0xff]
      %v345 = vld [vmem:[%s287 + $0xc8] sm:$0xff]
      %v346 = vld [vmem:[%s287 + $0xd0] sm:$0x3]
      %v347 = vld [vmem:[%s287 + $0xd8] sm:$0xff]
      %v348 = vld [vmem:[%s287 + $0xe0] sm:$0xff]
      %v349 = vld [vmem:[%s287 + $0xe8] sm:$0x3]
      %v350 = vld [vmem:[%s287 + $0xf0] sm:$0xff]
      %v351 = vld [vmem:[%s287 + $0xf8] sm:$0xff]
      %v352 = vld [vmem:[%s287 + $0x100] sm:$0x3]
      %v353 = vld [vmem:[%s287 + $0x108] sm:$0xff]
      %v354 = vld [vmem:[%s287 + $0x110] sm:$0xff]
      %v355 = vld [vmem:[%s287 + $0x118] sm:$0x3]
      %v356 = vld [vmem:[%s287 + $0x120] sm:$0xff]
      %v357 = vld [vmem:[%s287 + $0x128] sm:$0xff]
      %v358 = vld [vmem:[%s287 + $0x130] sm:$0x3]
      %v359 = vld [vmem:[%s287 + $0x138] sm:$0xff]
      %v360 = vld [vmem:[%s287 + $0x140] sm:$0xff]
      %v361 = vld [vmem:[%s287 + $0x148] sm:$0x3]
      %v362 = vld [vmem:[%s287 + $0x150] sm:$0xff]
      %v363 = vld [vmem:[%s287 + $0x158] sm:$0xff]
      %v364 = vld [vmem:[%s287 + $0x160] sm:$0x3]
      %v365 = vld [vmem:[%s287 + $0x168] sm:$0xff]
      %v366 = vld [vmem:[%s287 + $0x170] sm:$0xff]
      %v367 = vld [vmem:[%s287 + $0x178] sm:$0x3]
      %v368 = vld [vmem:[%s305] sm:$0xff]
      %v369 = vld [vmem:[%s305 + $0x8] sm:$0xff]
      %v370 = vld [vmem:[%s305 + $0x10] sm:$0x3]
      %v371 = vld [vmem:[%s305 + $0x18] sm:$0xff]
      %v372 = vld [vmem:[%s305 + $0x20] sm:$0xff]
      %v373 = vld [vmem:[%s305 + $0x28] sm:$0x3]
      %v374 = vld [vmem:[%s2] sm:$0xf]
      %vm423 = vcmask 1046528
      %v424 = vrot.slane %v320, 1
      %v425 = vrot.slane %v321, 1
      %v426 = vsel %vm423, %v424, %v425
      %v427 = vrot.slane %v322, 1
      %v428 = vsel %vm423, %v425, %v427
      %v429 = vrot.slane %v323, 1
      %v430 = vrot.slane %v324, 1
      %v431 = vsel %vm423, %v429, %v430
      %v432 = vrot.slane %v325, 1
      %v433 = vsel %vm423, %v430, %v432
      %v434 = vrot.slane %v326, 1
      %v435 = vrot.slane %v327, 1
      %v436 = vsel %vm423, %v434, %v435
      %v437 = vrot.slane %v328, 1
      %v438 = vsel %vm423, %v435, %v437
      %v439 = vrot.slane %v329, 1
      %v440 = vrot.slane %v330, 1
      %v441 = vsel %vm423, %v439, %v440
      %v442 = vrot.slane %v331, 1
      %v443 = vsel %vm423, %v440, %v442
      %v444 = vrot.slane %v332, 1
      %v445 = vrot.slane %v333, 1
      %v446 = vsel %vm423, %v444, %v445
      %v447 = vrot.slane %v334, 1
      %v448 = vsel %vm423, %v445, %v447
      %v449 = vrot.slane %v335, 1
      %v450 = vrot.slane %v336, 1
      %v451 = vsel %vm423, %v449, %v450
      %v452 = vrot.slane %v337, 1
      %v453 = vsel %vm423, %v450, %v452
      %v454 = vrot.slane %v338, 1
      %v455 = vrot.slane %v339, 1
      %v456 = vsel %vm423, %v454, %v455
      %v457 = vrot.slane %v340, 1
      %v458 = vsel %vm423, %v455, %v457
      %v459 = vrot.slane %v341, 1
      %v460 = vrot.slane %v342, 1
      %v461 = vsel %vm423, %v459, %v460
      %v462 = vrot.slane %v343, 1
      %v463 = vsel %vm423, %v460, %v462
      %v464 = vrot.slane %v344, 1
      %v465 = vrot.slane %v345, 1
      %v466 = vsel %vm423, %v464, %v465
      %v467 = vrot.slane %v346, 1
      %v468 = vsel %vm423, %v465, %v467
      %v469 = vrot.slane %v347, 1
      %v470 = vrot.slane %v348, 1
      %v471 = vsel %vm423, %v469, %v470
      %v472 = vrot.slane %v349, 1
      %v473 = vsel %vm423, %v470, %v472
      %v474 = vrot.slane %v350, 1
      %v475 = vrot.slane %v351, 1
      %v476 = vsel %vm423, %v474, %v475
      %v477 = vrot.slane %v352, 1
      %v478 = vsel %vm423, %v475, %v477
      %v479 = vrot.slane %v353, 1
      %v480 = vrot.slane %v354, 1
      %v481 = vsel %vm423, %v479, %v480
      %v482 = vrot.slane %v355, 1
      %v483 = vsel %vm423, %v480, %v482
      %v484 = vrot.slane %v356, 1
      %v485 = vrot.slane %v357, 1
      %v486 = vsel %vm423, %v484, %v485
      %v487 = vrot.slane %v358, 1
      %v488 = vsel %vm423, %v485, %v487
      %v489 = vrot.slane %v359, 1
      %v490 = vrot.slane %v360, 1
      %v491 = vsel %vm423, %v489, %v490
      %v492 = vrot.slane %v361, 1
      %v493 = vsel %vm423, %v490, %v492
      %v494 = vrot.slane %v362, 1
      %v495 = vrot.slane %v363, 1
      %v496 = vsel %vm423, %v494, %v495
      %v497 = vrot.slane %v364, 1
      %v498 = vsel %vm423, %v495, %v497
      %v499 = vrot.slane %v365, 1
      %v500 = vrot.slane %v366, 1
      %v501 = vsel %vm423, %v499, %v500
      %v502 = vrot.slane %v367, 1
      %v503 = vsel %vm423, %v500, %v502
      %s504 = scalar_lea.vmem %s2, 4
      %v505 = vld [vmem:[%s504] sm:$0xf]
      %vm506 = vcmask 31744
      %v507 = vsel %vm506, %v426, 0
      %v509 = vsel %vm506, %v428, 0
      %v511 = vsel %vm506, %v431, 0
      %v513 = vsel %vm506, %v433, 0
      %v515 = vsel %vm506, %v436, 0
      %v517 = vsel %vm506, %v438, 0
      %v519 = vsel %vm506, %v441, 0
      %v521 = vsel %vm506, %v443, 0
      %v523 = vsel %vm506, %v446, 0
      %v525 = vsel %vm506, %v448, 0
      %v527 = vsel %vm506, %v451, 0
      %v529 = vsel %vm506, %v453, 0
      %v531 = vsel %vm506, %v456, 0
      %v533 = vsel %vm506, %v458, 0
      %v535 = vsel %vm506, %v461, 0
      %v537 = vsel %vm506, %v463, 0
      %v539 = vsel %vm506, %v466, 0
      %v541 = vsel %vm506, %v468, 0
      %v543 = vsel %vm506, %v471, 0
      %v545 = vsel %vm506, %v473, 0
      %v547 = vsel %vm506, %v476, 0
      %v549 = vsel %vm506, %v478, 0
      %v551 = vsel %vm506, %v481, 0
      %v553 = vsel %vm506, %v483, 0
      %v555 = vsel %vm506, %v486, 0
      %v557 = vsel %vm506, %v488, 0
      %v559 = vsel %vm506, %v491, 0
      %v561 = vsel %vm506, %v493, 0
      %v563 = vsel %vm506, %v496, 0
      %v565 = vsel %vm506, %v498, 0
      %v567 = vsel %vm506, %v501, 0
      %v569 = vsel %vm506, %v503, 0
      %vm571 = vcmask 1043456
      %v573 = vsel %vm571, %v505, 0
      %575 = vmatpush.msra.mxu0 0.0
      %576 = vmatpush.msra.mxu0 0.0
      %577 = vmatpush.msra.mxu0 0.0
      %578 = vmatpush.msra.mxu0 0.0
      %579 = vmatpush.msra.mxu0 0.0
      %580 = vmatpush.msra.mxu0 0.0
      %581 = vmatpush.msra.mxu0 0.0
      %582 = vmatpush.msra.mxu0 0.0
      %583 = vmatpush.msra.mxu0 0.0
      %584 = vmatpush.msra.mxu0 0.0
      %585 = vmatpush.msra.mxu0 0.0
      %586 = vmatpush.msra.mxu0 0.0
      %587 = vmatpush.msra.mxu0 0.0
      %588 = vmatpush.msra.mxu0 0.0
      %589 = vmatpush.msra.mxu0 0.0
      %590 = vmatpush.msra.mxu0 %v573
      %591 = vmatmul.f32.gmra.mxu0 %v507
      %v592 = vpop.f32.mrf.mxu0
      %v593 = vadd.f32 0.0, %v592
      %594 = vmatmul.f32.gmra.mxu0 %v509
      %v595 = vpop.f32.mrf.mxu0
      %v596 = vadd.f32 0.0, %v595
      %597 = vmatmul.f32.gmra.mxu0 %v511
      %v598 = vpop.f32.mrf.mxu0
      %v599 = vadd.f32 0.0, %v598
      %600 = vmatmul.f32.gmra.mxu0 %v513
      %v601 = vpop.f32.mrf.mxu0
      %v602 = vadd.f32 0.0, %v601
      %603 = vmatmul.f32.gmra.mxu0 %v515
      %v604 = vpop.f32.mrf.mxu0
      %v605 = vadd.f32 0.0, %v604
      %606 = vmatmul.f32.gmra.mxu0 %v517
      %v607 = vpop.f32.mrf.mxu0
      %v608 = vadd.f32 0.0, %v607
      %609 = vmatmul.f32.gmra.mxu0 %v519
      %v610 = vpop.f32.mrf.mxu0
      %v611 = vadd.f32 0.0, %v610
      %612 = vmatmul.f32.gmra.mxu0 %v521
      %v613 = vpop.f32.mrf.mxu0
      %v614 = vadd.f32 0.0, %v613
      %615 = vmatmul.f32.gmra.mxu0 %v523
      %v616 = vpop.f32.mrf.mxu0
      %v617 = vadd.f32 0.0, %v616
      %618 = vmatmul.f32.gmra.mxu0 %v525
      %v619 = vpop.f32.mrf.mxu0
      %v620 = vadd.f32 0.0, %v619
      %621 = vmatmul.f32.gmra.mxu0 %v527
      %v622 = vpop.f32.mrf.mxu0
      %v623 = vadd.f32 0.0, %v622
      %624 = vmatmul.f32.gmra.mxu0 %v529
      %v625 = vpop.f32.mrf.mxu0
      %v626 = vadd.f32 0.0, %v625
      %627 = vmatmul.f32.gmra.mxu0 %v531
      %v628 = vpop.f32.mrf.mxu0
      %v629 = vadd.f32 0.0, %v628
      %630 = vmatmul.f32.gmra.mxu0 %v533
      %v631 = vpop.f32.mrf.mxu0
      %v632 = vadd.f32 0.0, %v631
      %633 = vmatmul.f32.gmra.mxu0 %v535
      %v634 = vpop.f32.mrf.mxu0
      %v635 = vadd.f32 0.0, %v634
      %636 = vmatmul.f32.gmra.mxu0 %v537
      %v637 = vpop.f32.mrf.mxu0
      %v638 = vadd.f32 0.0, %v637
      %639 = vmatmul.f32.gmra.mxu0 %v539
      %v640 = vpop.f32.mrf.mxu0
      %v641 = vadd.f32 0.0, %v640
      %642 = vmatmul.f32.gmra.mxu0 %v541
      %v643 = vpop.f32.mrf.mxu0
      %v644 = vadd.f32 0.0, %v643
      %645 = vmatmul.f32.gmra.mxu0 %v543
      %v646 = vpop.f32.mrf.mxu0
      %v647 = vadd.f32 0.0, %v646
      %648 = vmatmul.f32.gmra.mxu0 %v545
      %v649 = vpop.f32.mrf.mxu0
      %v650 = vadd.f32 0.0, %v649
      %651 = vmatmul.f32.gmra.mxu0 %v547
      %v652 = vpop.f32.mrf.mxu0
      %v653 = vadd.f32 0.0, %v652
      %654 = vmatmul.f32.gmra.mxu0 %v549
      %v655 = vpop.f32.mrf.mxu0
      %v656 = vadd.f32 0.0, %v655
      %657 = vmatmul.f32.gmra.mxu0 %v551
      %v658 = vpop.f32.mrf.mxu0
      %v659 = vadd.f32 0.0, %v658
      %660 = vmatmul.f32.gmra.mxu0 %v553
      %v661 = vpop.f32.mrf.mxu0
      %v662 = vadd.f32 0.0, %v661
      %663 = vmatmul.f32.gmra.mxu0 %v555
      %v664 = vpop.f32.mrf.mxu0
      %v665 = vadd.f32 0.0, %v664
      %666 = vmatmul.f32.gmra.mxu0 %v557
      %v667 = vpop.f32.mrf.mxu0
      %v668 = vadd.f32 0.0, %v667
      %669 = vmatmul.f32.gmra.mxu0 %v559
      %v670 = vpop.f32.mrf.mxu0
      %v671 = vadd.f32 0.0, %v670
      %672 = vmatmul.f32.gmra.mxu0 %v561
      %v673 = vpop.f32.mrf.mxu0
      %v674 = vadd.f32 0.0, %v673
      %675 = vmatmul.f32.gmra.mxu0 %v563
      %v676 = vpop.f32.mrf.mxu0
      %v677 = vadd.f32 0.0, %v676
      %678 = vmatmul.f32.gmra.mxu0 %v565
      %v679 = vpop.f32.mrf.mxu0
      %v680 = vadd.f32 0.0, %v679
      %681 = vmatmul.f32.gmra.mxu0 %v567
      %v682 = vpop.f32.mrf.mxu0
      %v683 = vadd.f32 0.0, %v682
      %684 = vmatmul.f32.gmra.mxu0 %v569
      %v685 = vpop.f32.mrf.mxu0
      %v686 = vadd.f32 0.0, %v685
      %687 = vdwg.mxu0
      %v688 = vsel %vm506, %v320, 0
      %v690 = vsel %vm506, %v321, 0
      %v692 = vsel %vm506, %v323, 0
      %v694 = vsel %vm506, %v324, 0
      %v696 = vsel %vm506, %v326, 0
      %v698 = vsel %vm506, %v327, 0
      %v700 = vsel %vm506, %v329, 0
      %v702 = vsel %vm506, %v330, 0
      %v704 = vsel %vm506, %v332, 0
      %v706 = vsel %vm506, %v333, 0
      %v708 = vsel %vm506, %v335, 0
      %v710 = vsel %vm506, %v336, 0
      %v712 = vsel %vm506, %v338, 0
      %v714 = vsel %vm506, %v339, 0
      %v716 = vsel %vm506, %v341, 0
      %v718 = vsel %vm506, %v342, 0
      %v720 = vsel %vm506, %v344, 0
      %v722 = vsel %vm506, %v345, 0
      %v724 = vsel %vm506, %v347, 0
      %v726 = vsel %vm506, %v348, 0
      %v728 = vsel %vm506, %v350, 0
      %v730 = vsel %vm506, %v351, 0
      %v732 = vsel %vm506, %v353, 0
      %v734 = vsel %vm506, %v354, 0
      %v736 = vsel %vm506, %v356, 0
      %v738 = vsel %vm506, %v357, 0
      %v740 = vsel %vm506, %v359, 0
      %v742 = vsel %vm506, %v360, 0
      %v744 = vsel %vm506, %v362, 0
      %v746 = vsel %vm506, %v363, 0
      %v748 = vsel %vm506, %v365, 0
      %v750 = vsel %vm506, %v366, 0
      %v753 = vsel %vm571, %v374, 0
      %755 = vmatpush.msra.mxu0 0.0
      %756 = vmatpush.msra.mxu0 0.0
      %757 = vmatpush.msra.mxu0 0.0
      %758 = vmatpush.msra.mxu0 0.0
      %759 = vmatpush.msra.mxu0 0.0
      %760 = vmatpush.msra.mxu0 0.0
      %761 = vmatpush.msra.mxu0 0.0
      %762 = vmatpush.msra.mxu0 0.0
      %763 = vmatpush.msra.mxu0 0.0
      %764 = vmatpush.msra.mxu0 0.0
      %765 = vmatpush.msra.mxu0 0.0
      %766 = vmatpush.msra.mxu0 0.0
      %767 = vmatpush.msra.mxu0 0.0
      %768 = vmatpush.msra.mxu0 0.0
      %769 = vmatpush.msra.mxu0 0.0
      %770 = vmatpush.msra.mxu0 %v753
      %771 = vmatmul.f32.gmra.mxu0 %v688
      %v772 = vpop.f32.mrf.mxu0
      %v773 = vadd.f32 %v593, %v772
      %774 = vmatmul.f32.gmra.mxu0 %v690
      %v775 = vpop.f32.mrf.mxu0
      %v776 = vadd.f32 %v596, %v775
      %777 = vmatmul.f32.gmra.mxu0 %v692
      %v778 = vpop.f32.mrf.mxu0
      %v779 = vadd.f32 %v599, %v778
      %780 = vmatmul.f32.gmra.mxu0 %v694
      %v781 = vpop.f32.mrf.mxu0
      %v782 = vadd.f32 %v602, %v781
      %783 = vmatmul.f32.gmra.mxu0 %v696
      %v784 = vpop.f32.mrf.mxu0
      %v785 = vadd.f32 %v605, %v784
      %786 = vmatmul.f32.gmra.mxu0 %v698
      %v787 = vpop.f32.mrf.mxu0
      %v788 = vadd.f32 %v608, %v787
      %789 = vmatmul.f32.gmra.mxu0 %v700
      %v790 = vpop.f32.mrf.mxu0
      %v791 = vadd.f32 %v611, %v790
      %792 = vmatmul.f32.gmra.mxu0 %v702
      %v793 = vpop.f32.mrf.mxu0
      %v794 = vadd.f32 %v614, %v793
      %795 = vmatmul.f32.gmra.mxu0 %v704
      %v796 = vpop.f32.mrf.mxu0
      %v797 = vadd.f32 %v617, %v796
      %798 = vmatmul.f32.gmra.mxu0 %v706
      %v799 = vpop.f32.mrf.mxu0
      %v800 = vadd.f32 %v620, %v799
      %801 = vmatmul.f32.gmra.mxu0 %v708
      %v802 = vpop.f32.mrf.mxu0
      %v803 = vadd.f32 %v623, %v802
      %804 = vmatmul.f32.gmra.mxu0 %v710
      %v805 = vpop.f32.mrf.mxu0
      %v806 = vadd.f32 %v626, %v805
      %807 = vmatmul.f32.gmra.mxu0 %v712
      %v808 = vpop.f32.mrf.mxu0
      %v809 = vadd.f32 %v629, %v808
      %810 = vmatmul.f32.gmra.mxu0 %v714
      %v811 = vpop.f32.mrf.mxu0
      %v812 = vadd.f32 %v632, %v811
      %813 = vmatmul.f32.gmra.mxu0 %v716
      %v814 = vpop.f32.mrf.mxu0
      %v815 = vadd.f32 %v635, %v814
      %816 = vmatmul.f32.gmra.mxu0 %v718
      %v817 = vpop.f32.mrf.mxu0
      %v818 = vadd.f32 %v638, %v817
      %819 = vmatmul.f32.gmra.mxu0 %v720
      %v820 = vpop.f32.mrf.mxu0
      %v821 = vadd.f32 %v641, %v820
      %822 = vmatmul.f32.gmra.mxu0 %v722
      %v823 = vpop.f32.mrf.mxu0
      %v824 = vadd.f32 %v644, %v823
      %825 = vmatmul.f32.gmra.mxu0 %v724
      %v826 = vpop.f32.mrf.mxu0
      %v827 = vadd.f32 %v647, %v826
      %828 = vmatmul.f32.gmra.mxu0 %v726
      %v829 = vpop.f32.mrf.mxu0
      %v830 = vadd.f32 %v650, %v829
      %831 = vmatmul.f32.gmra.mxu0 %v728
      %v832 = vpop.f32.mrf.mxu0
      %v833 = vadd.f32 %v653, %v832
      %834 = vmatmul.f32.gmra.mxu0 %v730
      %v835 = vpop.f32.mrf.mxu0
      %v836 = vadd.f32 %v656, %v835
      %837 = vmatmul.f32.gmra.mxu0 %v732
      %v838 = vpop.f32.mrf.mxu0
      %v839 = vadd.f32 %v659, %v838
      %840 = vmatmul.f32.gmra.mxu0 %v734
      %v841 = vpop.f32.mrf.mxu0
      %v842 = vadd.f32 %v662, %v841
      %843 = vmatmul.f32.gmra.mxu0 %v736
      %v844 = vpop.f32.mrf.mxu0
      %v845 = vadd.f32 %v665, %v844
      %846 = vmatmul.f32.gmra.mxu0 %v738
      %v847 = vpop.f32.mrf.mxu0
      %v848 = vadd.f32 %v668, %v847
      %849 = vmatmul.f32.gmra.mxu0 %v740
      %v850 = vpop.f32.mrf.mxu0
      %v851 = vadd.f32 %v671, %v850
      %852 = vmatmul.f32.gmra.mxu0 %v742
      %v853 = vpop.f32.mrf.mxu0
      %v854 = vadd.f32 %v674, %v853
      %855 = vmatmul.f32.gmra.mxu0 %v744
      %v856 = vpop.f32.mrf.mxu0
      %v857 = vadd.f32 %v677, %v856
      %858 = vmatmul.f32.gmra.mxu0 %v746
      %v859 = vpop.f32.mrf.mxu0
      %v860 = vadd.f32 %v680, %v859
      %861 = vmatmul.f32.gmra.mxu0 %v748
      %v862 = vpop.f32.mrf.mxu0
      %v863 = vadd.f32 %v683, %v862
      %864 = vmatmul.f32.gmra.mxu0 %v750
      %v865 = vpop.f32.mrf.mxu0
      %v866 = vadd.f32 %v686, %v865
      %867 = vdwg.mxu0
      %vm868 = vcmask 1045504
      %v869 = vrot.slane %v320, 2
      %v870 = vrot.slane %v321, 2
      %v871 = vsel %vm868, %v869, %v870
      %v872 = vrot.slane %v322, 2
      %v873 = vsel %vm868, %v870, %v872
      %v874 = vrot.slane %v323, 2
      %v875 = vrot.slane %v324, 2
      %v876 = vsel %vm868, %v874, %v875
      %v877 = vrot.slane %v325, 2
      %v878 = vsel %vm868, %v875, %v877
      %v879 = vrot.slane %v326, 2
      %v880 = vrot.slane %v327, 2
      %v881 = vsel %vm868, %v879, %v880
      %v882 = vrot.slane %v328, 2
      %v883 = vsel %vm868, %v880, %v882
      %v884 = vrot.slane %v329, 2
      %v885 = vrot.slane %v330, 2
      %v886 = vsel %vm868, %v884, %v885
      %v887 = vrot.slane %v331, 2
      %v888 = vsel %vm868, %v885, %v887
      %v889 = vrot.slane %v332, 2
      %v890 = vrot.slane %v333, 2
      %v891 = vsel %vm868, %v889, %v890
      %v892 = vrot.slane %v334, 2
      %v893 = vsel %vm868, %v890, %v892
      %v894 = vrot.slane %v335, 2
      %v895 = vrot.slane %v336, 2
      %v896 = vsel %vm868, %v894, %v895
      %v897 = vrot.slane %v337, 2
      %v898 = vsel %vm868, %v895, %v897
      %v899 = vrot.slane %v338, 2
      %v900 = vrot.slane %v339, 2
      %v901 = vsel %vm868, %v899, %v900
      %v902 = vrot.slane %v340, 2
      %v903 = vsel %vm868, %v900, %v902
      %v904 = vrot.slane %v341, 2
      %v905 = vrot.slane %v342, 2
      %v906 = vsel %vm868, %v904, %v905
      %v907 = vrot.slane %v343, 2
      %v908 = vsel %vm868, %v905, %v907
      %v909 = vrot.slane %v344, 2
      %v910 = vrot.slane %v345, 2
      %v911 = vsel %vm868, %v909, %v910
      %v912 = vrot.slane %v346, 2
      %v913 = vsel %vm868, %v910, %v912
      %v914 = vrot.slane %v347, 2
      %v915 = vrot.slane %v348, 2
      %v916 = vsel %vm868, %v914, %v915
      %v917 = vrot.slane %v349, 2
      %v918 = vsel %vm868, %v915, %v917
      %v919 = vrot.slane %v350, 2
      %v920 = vrot.slane %v351, 2
      %v921 = vsel %vm868, %v919, %v920
      %v922 = vrot.slane %v352, 2
      %v923 = vsel %vm868, %v920, %v922
      %v924 = vrot.slane %v353, 2
      %v925 = vrot.slane %v354, 2
      %v926 = vsel %vm868, %v924, %v925
      %v927 = vrot.slane %v355, 2
      %v928 = vsel %vm868, %v925, %v927
      %v929 = vrot.slane %v356, 2
      %v930 = vrot.slane %v357, 2
      %v931 = vsel %vm868, %v929, %v930
      %v932 = vrot.slane %v358, 2
      %v933 = vsel %vm868, %v930, %v932
      %v934 = vrot.slane %v359, 2
      %v935 = vrot.slane %v360, 2
      %v936 = vsel %vm868, %v934, %v935
      %v937 = vrot.slane %v361, 2
      %v938 = vsel %vm868, %v935, %v937
      %v939 = vrot.slane %v362, 2
      %v940 = vrot.slane %v363, 2
      %v941 = vsel %vm868, %v939, %v940
      %v942 = vrot.slane %v364, 2
      %v943 = vsel %vm868, %v940, %v942
      %v944 = vrot.slane %v365, 2
      %v945 = vrot.slane %v366, 2
      %v946 = vsel %vm868, %v944, %v945
      %v947 = vrot.slane %v367, 2
      %v948 = vsel %vm868, %v945, %v947
      %s949 = scalar_lea.vmem %s2, 8
      %v950 = vld [vmem:[%s949] sm:$0xf]
      %v951 = vsel %vm506, %v871, 0
      %v953 = vsel %vm506, %v873, 0
      %v955 = vsel %vm506, %v876, 0
      %v957 = vsel %vm506, %v878, 0
      %v959 = vsel %vm506, %v881, 0
      %v961 = vsel %vm506, %v883, 0
      %v963 = vsel %vm506, %v886, 0
      %v965 = vsel %vm506, %v888, 0
      %v967 = vsel %vm506, %v891, 0
      %v969 = vsel %vm506, %v893, 0
      %v971 = vsel %vm506, %v896, 0
      %v973 = vsel %vm506, %v898, 0
      %v975 = vsel %vm506, %v901, 0
      %v977 = vsel %vm506, %v903, 0
      %v979 = vsel %vm506, %v906, 0
      %v981 = vsel %vm506, %v908, 0
      %v983 = vsel %vm506, %v911, 0
      %v985 = vsel %vm506, %v913, 0
      %v987 = vsel %vm506, %v916, 0
      %v989 = vsel %vm506, %v918, 0
      %v991 = vsel %vm506, %v921, 0
      %v993 = vsel %vm506, %v923, 0
      %v995 = vsel %vm506, %v926, 0
      %v997 = vsel %vm506, %v928, 0
      %v999 = vsel %vm506, %v931, 0
      %v1001 = vsel %vm506, %v933, 0
      %v1003 = vsel %vm506, %v936, 0
      %v1005 = vsel %vm506, %v938, 0
      %v1007 = vsel %vm506, %v941, 0
      %v1009 = vsel %vm506, %v943, 0
      %v1011 = vsel %vm506, %v946, 0
      %v1013 = vsel %vm506, %v948, 0
      %v1016 = vsel %vm571, %v950, 0
      %1018 = vmatpush.msra.mxu0 0.0
      %1019 = vmatpush.msra.mxu0 0.0
      %1020 = vmatpush.msra.mxu0 0.0
      %1021 = vmatpush.msra.mxu0 0.0
      %1022 = vmatpush.msra.mxu0 0.0
      %1023 = vmatpush.msra.mxu0 0.0
      %1024 = vmatpush.msra.mxu0 0.0
      %1025 = vmatpush.msra.mxu0 0.0
      %1026 = vmatpush.msra.mxu0 0.0
      %1027 = vmatpush.msra.mxu0 0.0
      %1028 = vmatpush.msra.mxu0 0.0
      %1029 = vmatpush.msra.mxu0 0.0
      %1030 = vmatpush.msra.mxu0 0.0
      %1031 = vmatpush.msra.mxu0 0.0
      %1032 = vmatpush.msra.mxu0 0.0
      %1033 = vmatpush.msra.mxu0 %v1016
      %1034 = vmatmul.f32.gmra.mxu0 %v951
      %v1035 = vpop.f32.mrf.mxu0
      %v1036 = vadd.f32 0.0, %v1035
      %1037 = vmatmul.f32.gmra.mxu0 %v953
      %v1038 = vpop.f32.mrf.mxu0
      %v1039 = vadd.f32 0.0, %v1038
      %1040 = vmatmul.f32.gmra.mxu0 %v955
      %v1041 = vpop.f32.mrf.mxu0
      %v1042 = vadd.f32 0.0, %v1041
      %1043 = vmatmul.f32.gmra.mxu0 %v957
      %v1044 = vpop.f32.mrf.mxu0
      %v1045 = vadd.f32 0.0, %v1044
      %1046 = vmatmul.f32.gmra.mxu0 %v959
      %v1047 = vpop.f32.mrf.mxu0
      %v1048 = vadd.f32 0.0, %v1047
      %1049 = vmatmul.f32.gmra.mxu0 %v961
      %v1050 = vpop.f32.mrf.mxu0
      %v1051 = vadd.f32 0.0, %v1050
      %1052 = vmatmul.f32.gmra.mxu0 %v963
      %v1053 = vpop.f32.mrf.mxu0
      %v1054 = vadd.f32 0.0, %v1053
      %1055 = vmatmul.f32.gmra.mxu0 %v965
      %v1056 = vpop.f32.mrf.mxu0
      %v1057 = vadd.f32 0.0, %v1056
      %1058 = vmatmul.f32.gmra.mxu0 %v967
      %v1059 = vpop.f32.mrf.mxu0
      %v1060 = vadd.f32 0.0, %v1059
      %1061 = vmatmul.f32.gmra.mxu0 %v969
      %v1062 = vpop.f32.mrf.mxu0
      %v1063 = vadd.f32 0.0, %v1062
      %1064 = vmatmul.f32.gmra.mxu0 %v971
      %v1065 = vpop.f32.mrf.mxu0
      %v1066 = vadd.f32 0.0, %v1065
      %1067 = vmatmul.f32.gmra.mxu0 %v973
      %v1068 = vpop.f32.mrf.mxu0
      %v1069 = vadd.f32 0.0, %v1068
      %1070 = vmatmul.f32.gmra.mxu0 %v975
      %v1071 = vpop.f32.mrf.mxu0
      %v1072 = vadd.f32 0.0, %v1071
      %1073 = vmatmul.f32.gmra.mxu0 %v977
      %v1074 = vpop.f32.mrf.mxu0
      %v1075 = vadd.f32 0.0, %v1074
      %1076 = vmatmul.f32.gmra.mxu0 %v979
      %v1077 = vpop.f32.mrf.mxu0
      %v1078 = vadd.f32 0.0, %v1077
      %1079 = vmatmul.f32.gmra.mxu0 %v981
      %v1080 = vpop.f32.mrf.mxu0
      %v1081 = vadd.f32 0.0, %v1080
      %1082 = vmatmul.f32.gmra.mxu0 %v983
      %v1083 = vpop.f32.mrf.mxu0
      %v1084 = vadd.f32 0.0, %v1083
      %1085 = vmatmul.f32.gmra.mxu0 %v985
      %v1086 = vpop.f32.mrf.mxu0
      %v1087 = vadd.f32 0.0, %v1086
      %1088 = vmatmul.f32.gmra.mxu0 %v987
      %v1089 = vpop.f32.mrf.mxu0
      %v1090 = vadd.f32 0.0, %v1089
      %1091 = vmatmul.f32.gmra.mxu0 %v989
      %v1092 = vpop.f32.mrf.mxu0
      %v1093 = vadd.f32 0.0, %v1092
      %1094 = vmatmul.f32.gmra.mxu0 %v991
      %v1095 = vpop.f32.mrf.mxu0
      %v1096 = vadd.f32 0.0, %v1095
      %1097 = vmatmul.f32.gmra.mxu0 %v993
      %v1098 = vpop.f32.mrf.mxu0
      %v1099 = vadd.f32 0.0, %v1098
      %1100 = vmatmul.f32.gmra.mxu0 %v995
      %v1101 = vpop.f32.mrf.mxu0
      %v1102 = vadd.f32 0.0, %v1101
      %1103 = vmatmul.f32.gmra.mxu0 %v997
      %v1104 = vpop.f32.mrf.mxu0
      %v1105 = vadd.f32 0.0, %v1104
      %1106 = vmatmul.f32.gmra.mxu0 %v999
      %v1107 = vpop.f32.mrf.mxu0
      %v1108 = vadd.f32 0.0, %v1107
      %1109 = vmatmul.f32.gmra.mxu0 %v1001
      %v1110 = vpop.f32.mrf.mxu0
      %v1111 = vadd.f32 0.0, %v1110
      %1112 = vmatmul.f32.gmra.mxu0 %v1003
      %v1113 = vpop.f32.mrf.mxu0
      %v1114 = vadd.f32 0.0, %v1113
      %1115 = vmatmul.f32.gmra.mxu0 %v1005
      %v1116 = vpop.f32.mrf.mxu0
      %v1117 = vadd.f32 0.0, %v1116
      %1118 = vmatmul.f32.gmra.mxu0 %v1007
      %v1119 = vpop.f32.mrf.mxu0
      %v1120 = vadd.f32 0.0, %v1119
      %1121 = vmatmul.f32.gmra.mxu0 %v1009
      %v1122 = vpop.f32.mrf.mxu0
      %v1123 = vadd.f32 0.0, %v1122
      %1124 = vmatmul.f32.gmra.mxu0 %v1011
      %v1125 = vpop.f32.mrf.mxu0
      %v1126 = vadd.f32 0.0, %v1125
      %1127 = vmatmul.f32.gmra.mxu0 %v1013
      %v1128 = vpop.f32.mrf.mxu0
      %v1129 = vadd.f32 0.0, %v1128
      %1130 = vdwg.mxu0
      %v1131 = vadd.f32 %v773, %v1036
      %v1132 = vadd.f32 %v776, %v1039
      %v1133 = vadd.f32 %v779, %v1042
      %v1134 = vadd.f32 %v782, %v1045
      %v1135 = vadd.f32 %v785, %v1048
      %v1136 = vadd.f32 %v788, %v1051
      %v1137 = vadd.f32 %v791, %v1054
      %v1138 = vadd.f32 %v794, %v1057
      %v1139 = vadd.f32 %v797, %v1060
      %v1140 = vadd.f32 %v800, %v1063
      %v1141 = vadd.f32 %v803, %v1066
      %v1142 = vadd.f32 %v806, %v1069
      %v1143 = vadd.f32 %v809, %v1072
      %v1144 = vadd.f32 %v812, %v1075
      %v1145 = vadd.f32 %v815, %v1078
      %v1146 = vadd.f32 %v818, %v1081
      %v1147 = vadd.f32 %v821, %v1084
      %v1148 = vadd.f32 %v824, %v1087
      %v1149 = vadd.f32 %v827, %v1090
      %v1150 = vadd.f32 %v830, %v1093
      %v1151 = vadd.f32 %v833, %v1096
      %v1152 = vadd.f32 %v836, %v1099
      %v1153 = vadd.f32 %v839, %v1102
      %v1154 = vadd.f32 %v842, %v1105
      %v1155 = vadd.f32 %v845, %v1108
      %v1156 = vadd.f32 %v848, %v1111
      %v1157 = vadd.f32 %v851, %v1114
      %v1158 = vadd.f32 %v854, %v1117
      %v1159 = vadd.f32 %v857, %v1120
      %v1160 = vadd.f32 %v860, %v1123
      %v1161 = vadd.f32 %v863, %v1126
      %v1162 = vadd.f32 %v866, %v1129
      %s1163 = scalar_lea.vmem %s2, 12
      %v1164 = vld [vmem:[%s1163] sm:$0xf]
      %v1166 = vsel %vm506, %v368, 0
      %v1169 = vsel %vm506, %v369, 0
      %v1172 = vsel %vm571, %v1164, 0
      %1174 = vmatpush.msra.mxu0 0.0
      %1175 = vmatpush.msra.mxu0 0.0
      %1176 = vmatpush.msra.mxu0 0.0
      %1177 = vmatpush.msra.mxu0 0.0
      %1178 = vmatpush.msra.mxu0 0.0
      %1179 = vmatpush.msra.mxu0 0.0
      %1180 = vmatpush.msra.mxu0 0.0
      %1181 = vmatpush.msra.mxu0 0.0
      %1182 = vmatpush.msra.mxu0 0.0
      %1183 = vmatpush.msra.mxu0 0.0
      %1184 = vmatpush.msra.mxu0 0.0
      %1185 = vmatpush.msra.mxu0 0.0
      %1186 = vmatpush.msra.mxu0 0.0
      %1187 = vmatpush.msra.mxu0 0.0
      %1188 = vmatpush.msra.mxu0 0.0
      %1189 = vmatpush.msra.mxu0 %v1172
      %1190 = vmatmul.f32.gmra.mxu0 %v692
      %v1191 = vpop.f32.mrf.mxu0
      %v1192 = vadd.f32 0.0, %v1191
      %1193 = vmatmul.f32.gmra.mxu0 %v694
      %v1194 = vpop.f32.mrf.mxu0
      %v1195 = vadd.f32 0.0, %v1194
      %1196 = vmatmul.f32.gmra.mxu0 %v696
      %v1197 = vpop.f32.mrf.mxu0
      %v1198 = vadd.f32 0.0, %v1197
      %1199 = vmatmul.f32.gmra.mxu0 %v698
      %v1200 = vpop.f32.mrf.mxu0
      %v1201 = vadd.f32 0.0, %v1200
      %1202 = vmatmul.f32.gmra.mxu0 %v700
      %v1203 = vpop.f32.mrf.mxu0
      %v1204 = vadd.f32 0.0, %v1203
      %1205 = vmatmul.f32.gmra.mxu0 %v702
      %v1206 = vpop.f32.mrf.mxu0
      %v1207 = vadd.f32 0.0, %v1206
      %1208 = vmatmul.f32.gmra.mxu0 %v704
      %v1209 = vpop.f32.mrf.mxu0
      %v1210 = vadd.f32 0.0, %v1209
      %1211 = vmatmul.f32.gmra.mxu0 %v706
      %v1212 = vpop.f32.mrf.mxu0
      %v1213 = vadd.f32 0.0, %v1212
      %1214 = vmatmul.f32.gmra.mxu0 %v708
      %v1215 = vpop.f32.mrf.mxu0
      %v1216 = vadd.f32 0.0, %v1215
      %1217 = vmatmul.f32.gmra.mxu0 %v710
      %v1218 = vpop.f32.mrf.mxu0
      %v1219 = vadd.f32 0.0, %v1218
      %1220 = vmatmul.f32.gmra.mxu0 %v712
      %v1221 = vpop.f32.mrf.mxu0
      %v1222 = vadd.f32 0.0, %v1221
      %1223 = vmatmul.f32.gmra.mxu0 %v714
      %v1224 = vpop.f32.mrf.mxu0
      %v1225 = vadd.f32 0.0, %v1224
      %1226 = vmatmul.f32.gmra.mxu0 %v716
      %v1227 = vpop.f32.mrf.mxu0
      %v1228 = vadd.f32 0.0, %v1227
      %1229 = vmatmul.f32.gmra.mxu0 %v718
      %v1230 = vpop.f32.mrf.mxu0
      %v1231 = vadd.f32 0.0, %v1230
      %1232 = vmatmul.f32.gmra.mxu0 %v720
      %v1233 = vpop.f32.mrf.mxu0
      %v1234 = vadd.f32 0.0, %v1233
      %1235 = vmatmul.f32.gmra.mxu0 %v722
      %v1236 = vpop.f32.mrf.mxu0
      %v1237 = vadd.f32 0.0, %v1236
      %1238 = vmatmul.f32.gmra.mxu0 %v724
      %v1239 = vpop.f32.mrf.mxu0
      %v1240 = vadd.f32 0.0, %v1239
      %1241 = vmatmul.f32.gmra.mxu0 %v726
      %v1242 = vpop.f32.mrf.mxu0
      %v1243 = vadd.f32 0.0, %v1242
      %1244 = vmatmul.f32.gmra.mxu0 %v728
      %v1245 = vpop.f32.mrf.mxu0
      %v1246 = vadd.f32 0.0, %v1245
      %1247 = vmatmul.f32.gmra.mxu0 %v730
      %v1248 = vpop.f32.mrf.mxu0
      %v1249 = vadd.f32 0.0, %v1248
      %1250 = vmatmul.f32.gmra.mxu0 %v732
      %v1251 = vpop.f32.mrf.mxu0
      %v1252 = vadd.f32 0.0, %v1251
      %1253 = vmatmul.f32.gmra.mxu0 %v734
      %v1254 = vpop.f32.mrf.mxu0
      %v1255 = vadd.f32 0.0, %v1254
      %1256 = vmatmul.f32.gmra.mxu0 %v736
      %v1257 = vpop.f32.mrf.mxu0
      %v1258 = vadd.f32 0.0, %v1257
      %1259 = vmatmul.f32.gmra.mxu0 %v738
      %v1260 = vpop.f32.mrf.mxu0
      %v1261 = vadd.f32 0.0, %v1260
      %1262 = vmatmul.f32.gmra.mxu0 %v740
      %v1263 = vpop.f32.mrf.mxu0
      %v1264 = vadd.f32 0.0, %v1263
      %1265 = vmatmul.f32.gmra.mxu0 %v742
      %v1266 = vpop.f32.mrf.mxu0
      %v1267 = vadd.f32 0.0, %v1266
      %1268 = vmatmul.f32.gmra.mxu0 %v744
      %v1269 = vpop.f32.mrf.mxu0
      %v1270 = vadd.f32 0.0, %v1269
      %1271 = vmatmul.f32.gmra.mxu0 %v746
      %v1272 = vpop.f32.mrf.mxu0
      %v1273 = vadd.f32 0.0, %v1272
      %1274 = vmatmul.f32.gmra.mxu0 %v748
      %v1275 = vpop.f32.mrf.mxu0
      %v1276 = vadd.f32 0.0, %v1275
      %1277 = vmatmul.f32.gmra.mxu0 %v750
      %v1278 = vpop.f32.mrf.mxu0
      %v1279 = vadd.f32 0.0, %v1278
      %1280 = vmatmul.f32.gmra.mxu0 %v1166
      %v1281 = vpop.f32.mrf.mxu0
      %v1282 = vadd.f32 0.0, %v1281
      %1283 = vmatmul.f32.gmra.mxu0 %v1169
      %v1284 = vpop.f32.mrf.mxu0
      %v1285 = vadd.f32 0.0, %v1284
      %1286 = vdwg.mxu0
      %v1287 = vadd.f32 %v1131, %v1192
      %v1288 = vadd.f32 %v1132, %v1195
      %v1289 = vadd.f32 %v1133, %v1198
      %v1290 = vadd.f32 %v1134, %v1201
      %v1291 = vadd.f32 %v1135, %v1204
      %v1292 = vadd.f32 %v1136, %v1207
      %v1293 = vadd.f32 %v1137, %v1210
      %v1294 = vadd.f32 %v1138, %v1213
      %v1295 = vadd.f32 %v1139, %v1216
      %v1296 = vadd.f32 %v1140, %v1219
      %v1297 = vadd.f32 %v1141, %v1222
      %v1298 = vadd.f32 %v1142, %v1225
      %v1299 = vadd.f32 %v1143, %v1228
      %v1300 = vadd.f32 %v1144, %v1231
      %v1301 = vadd.f32 %v1145, %v1234
      %v1302 = vadd.f32 %v1146, %v1237
      %v1303 = vadd.f32 %v1147, %v1240
      %v1304 = vadd.f32 %v1148, %v1243
      %v1305 = vadd.f32 %v1149, %v1246
      %v1306 = vadd.f32 %v1150, %v1249
      %v1307 = vadd.f32 %v1151, %v1252
      %v1308 = vadd.f32 %v1152, %v1255
      %v1309 = vadd.f32 %v1153, %v1258
      %v1310 = vadd.f32 %v1154, %v1261
      %v1311 = vadd.f32 %v1155, %v1264
      %v1312 = vadd.f32 %v1156, %v1267
      %v1313 = vadd.f32 %v1157, %v1270
      %v1314 = vadd.f32 %v1158, %v1273
      %v1315 = vadd.f32 %v1159, %v1276
      %v1316 = vadd.f32 %v1160, %v1279
      %v1317 = vadd.f32 %v1161, %v1282
      %v1318 = vadd.f32 %v1162, %v1285
      %v1320 = vrot.slane %v368, 1
      %v1321 = vrot.slane %v369, 1
      %v1322 = vsel %vm423, %v1320, %v1321
      %v1323 = vrot.slane %v370, 1
      %v1324 = vsel %vm423, %v1321, %v1323
      %s1325 = scalar_lea.vmem %s2, 16
      %v1326 = vld [vmem:[%s1325] sm:$0xf]
      %v1327 = vsel %vm506, %v1322, 0
      %v1329 = vsel %vm506, %v1324, 0
      %v1332 = vsel %vm571, %v1326, 0
      %1334 = vmatpush.msra.mxu0 0.0
      %1335 = vmatpush.msra.mxu0 0.0
      %1336 = vmatpush.msra.mxu0 0.0
      %1337 = vmatpush.msra.mxu0 0.0
      %1338 = vmatpush.msra.mxu0 0.0
      %1339 = vmatpush.msra.mxu0 0.0
      %1340 = vmatpush.msra.mxu0 0.0
      %1341 = vmatpush.msra.mxu0 0.0
      %1342 = vmatpush.msra.mxu0 0.0
      %1343 = vmatpush.msra.mxu0 0.0
      %1344 = vmatpush.msra.mxu0 0.0
      %1345 = vmatpush.msra.mxu0 0.0
      %1346 = vmatpush.msra.mxu0 0.0
      %1347 = vmatpush.msra.mxu0 0.0
      %1348 = vmatpush.msra.mxu0 0.0
      %1349 = vmatpush.msra.mxu0 %v1332
      %1350 = vmatmul.f32.gmra.mxu0 %v511
      %v1351 = vpop.f32.mrf.mxu0
      %v1352 = vadd.f32 0.0, %v1351
      %1353 = vmatmul.f32.gmra.mxu0 %v513
      %v1354 = vpop.f32.mrf.mxu0
      %v1355 = vadd.f32 0.0, %v1354
      %1356 = vmatmul.f32.gmra.mxu0 %v515
      %v1357 = vpop.f32.mrf.mxu0
      %v1358 = vadd.f32 0.0, %v1357
      %1359 = vmatmul.f32.gmra.mxu0 %v517
      %v1360 = vpop.f32.mrf.mxu0
      %v1361 = vadd.f32 0.0, %v1360
      %1362 = vmatmul.f32.gmra.mxu0 %v519
      %v1363 = vpop.f32.mrf.mxu0
      %v1364 = vadd.f32 0.0, %v1363
      %1365 = vmatmul.f32.gmra.mxu0 %v521
      %v1366 = vpop.f32.mrf.mxu0
      %v1367 = vadd.f32 0.0, %v1366
      %1368 = vmatmul.f32.gmra.mxu0 %v523
      %v1369 = vpop.f32.mrf.mxu0
      %v1370 = vadd.f32 0.0, %v1369
      %1371 = vmatmul.f32.gmra.mxu0 %v525
      %v1372 = vpop.f32.mrf.mxu0
      %v1373 = vadd.f32 0.0, %v1372
      %1374 = vmatmul.f32.gmra.mxu0 %v527
      %v1375 = vpop.f32.mrf.mxu0
      %v1376 = vadd.f32 0.0, %v1375
      %1377 = vmatmul.f32.gmra.mxu0 %v529
      %v1378 = vpop.f32.mrf.mxu0
      %v1379 = vadd.f32 0.0, %v1378
      %1380 = vmatmul.f32.gmra.mxu0 %v531
      %v1381 = vpop.f32.mrf.mxu0
      %v1382 = vadd.f32 0.0, %v1381
      %1383 = vmatmul.f32.gmra.mxu0 %v533
      %v1384 = vpop.f32.mrf.mxu0
      %v1385 = vadd.f32 0.0, %v1384
      %1386 = vmatmul.f32.gmra.mxu0 %v535
      %v1387 = vpop.f32.mrf.mxu0
      %v1388 = vadd.f32 0.0, %v1387
      %1389 = vmatmul.f32.gmra.mxu0 %v537
      %v1390 = vpop.f32.mrf.mxu0
      %v1391 = vadd.f32 0.0, %v1390
      %1392 = vmatmul.f32.gmra.mxu0 %v539
      %v1393 = vpop.f32.mrf.mxu0
      %v1394 = vadd.f32 0.0, %v1393
      %1395 = vmatmul.f32.gmra.mxu0 %v541
      %v1396 = vpop.f32.mrf.mxu0
      %v1397 = vadd.f32 0.0, %v1396
      %1398 = vmatmul.f32.gmra.mxu0 %v543
      %v1399 = vpop.f32.mrf.mxu0
      %v1400 = vadd.f32 0.0, %v1399
      %1401 = vmatmul.f32.gmra.mxu0 %v545
      %v1402 = vpop.f32.mrf.mxu0
      %v1403 = vadd.f32 0.0, %v1402
      %1404 = vmatmul.f32.gmra.mxu0 %v547
      %v1405 = vpop.f32.mrf.mxu0
      %v1406 = vadd.f32 0.0, %v1405
      %1407 = vmatmul.f32.gmra.mxu0 %v549
      %v1408 = vpop.f32.mrf.mxu0
      %v1409 = vadd.f32 0.0, %v1408
      %1410 = vmatmul.f32.gmra.mxu0 %v551
      %v1411 = vpop.f32.mrf.mxu0
      %v1412 = vadd.f32 0.0, %v1411
      %1413 = vmatmul.f32.gmra.mxu0 %v553
      %v1414 = vpop.f32.mrf.mxu0
      %v1415 = vadd.f32 0.0, %v1414
      %1416 = vmatmul.f32.gmra.mxu0 %v555
      %v1417 = vpop.f32.mrf.mxu0
      %v1418 = vadd.f32 0.0, %v1417
      %1419 = vmatmul.f32.gmra.mxu0 %v557
      %v1420 = vpop.f32.mrf.mxu0
      %v1421 = vadd.f32 0.0, %v1420
      %1422 = vmatmul.f32.gmra.mxu0 %v559
      %v1423 = vpop.f32.mrf.mxu0
      %v1424 = vadd.f32 0.0, %v1423
      %1425 = vmatmul.f32.gmra.mxu0 %v561
      %v1426 = vpop.f32.mrf.mxu0
      %v1427 = vadd.f32 0.0, %v1426
      %1428 = vmatmul.f32.gmra.mxu0 %v563
      %v1429 = vpop.f32.mrf.mxu0
      %v1430 = vadd.f32 0.0, %v1429
      %1431 = vmatmul.f32.gmra.mxu0 %v565
      %v1432 = vpop.f32.mrf.mxu0
      %v1433 = vadd.f32 0.0, %v1432
      %1434 = vmatmul.f32.gmra.mxu0 %v567
      %v1435 = vpop.f32.mrf.mxu0
      %v1436 = vadd.f32 0.0, %v1435
      %1437 = vmatmul.f32.gmra.mxu0 %v569
      %v1438 = vpop.f32.mrf.mxu0
      %v1439 = vadd.f32 0.0, %v1438
      %1440 = vmatmul.f32.gmra.mxu0 %v1327
      %v1441 = vpop.f32.mrf.mxu0
      %v1442 = vadd.f32 0.0, %v1441
      %1443 = vmatmul.f32.gmra.mxu0 %v1329
      %v1444 = vpop.f32.mrf.mxu0
      %v1445 = vadd.f32 0.0, %v1444
      %1446 = vdwg.mxu0
      %v1447 = vadd.f32 %v1287, %v1352
      %v1448 = vadd.f32 %v1288, %v1355
      %v1449 = vadd.f32 %v1289, %v1358
      %v1450 = vadd.f32 %v1290, %v1361
      %v1451 = vadd.f32 %v1291, %v1364
      %v1452 = vadd.f32 %v1292, %v1367
      %v1453 = vadd.f32 %v1293, %v1370
      %v1454 = vadd.f32 %v1294, %v1373
      %v1455 = vadd.f32 %v1295, %v1376
      %v1456 = vadd.f32 %v1296, %v1379
      %v1457 = vadd.f32 %v1297, %v1382
      %v1458 = vadd.f32 %v1298, %v1385
      %v1459 = vadd.f32 %v1299, %v1388
      %v1460 = vadd.f32 %v1300, %v1391
      %v1461 = vadd.f32 %v1301, %v1394
      %v1462 = vadd.f32 %v1302, %v1397
      %v1463 = vadd.f32 %v1303, %v1400
      %v1464 = vadd.f32 %v1304, %v1403
      %v1465 = vadd.f32 %v1305, %v1406
      %v1466 = vadd.f32 %v1306, %v1409
      %v1467 = vadd.f32 %v1307, %v1412
      %v1468 = vadd.f32 %v1308, %v1415
      %v1469 = vadd.f32 %v1309, %v1418
      %v1470 = vadd.f32 %v1310, %v1421
      %v1471 = vadd.f32 %v1311, %v1424
      %v1472 = vadd.f32 %v1312, %v1427
      %v1473 = vadd.f32 %v1313, %v1430
      %v1474 = vadd.f32 %v1314, %v1433
      %v1475 = vadd.f32 %v1315, %v1436
      %v1476 = vadd.f32 %v1316, %v1439
      %v1477 = vadd.f32 %v1317, %v1442
      %v1478 = vadd.f32 %v1318, %v1445
      %v1479 = vrot.slane %v368, 2
      %v1480 = vrot.slane %v369, 2
      %v1481 = vsel %vm868, %v1479, %v1480
      %v1482 = vrot.slane %v370, 2
      %v1483 = vsel %vm868, %v1480, %v1482
      %s1484 = scalar_lea.vmem %s2, 20
      %v1485 = vld [vmem:[%s1484] sm:$0xf]
      %v1486 = vsel %vm506, %v1481, 0
      %v1488 = vsel %vm506, %v1483, 0
      %v1491 = vsel %vm571, %v1485, 0
      %1493 = vmatpush.msra.mxu0 0.0
      %1494 = vmatpush.msra.mxu0 0.0
      %1495 = vmatpush.msra.mxu0 0.0
      %1496 = vmatpush.msra.mxu0 0.0
      %1497 = vmatpush.msra.mxu0 0.0
      %1498 = vmatpush.msra.mxu0 0.0
      %1499 = vmatpush.msra.mxu0 0.0
      %1500 = vmatpush.msra.mxu0 0.0
      %1501 = vmatpush.msra.mxu0 0.0
      %1502 = vmatpush.msra.mxu0 0.0
      %1503 = vmatpush.msra.mxu0 0.0
      %1504 = vmatpush.msra.mxu0 0.0
      %1505 = vmatpush.msra.mxu0 0.0
      %1506 = vmatpush.msra.mxu0 0.0
      %1507 = vmatpush.msra.mxu0 0.0
      %1508 = vmatpush.msra.mxu0 %v1491
      %1509 = vmatmul.f32.gmra.mxu0 %v955
      %v1510 = vpop.f32.mrf.mxu0
      %v1511 = vadd.f32 0.0, %v1510
      %1512 = vmatmul.f32.gmra.mxu0 %v957
      %v1513 = vpop.f32.mrf.mxu0
      %v1514 = vadd.f32 0.0, %v1513
      %1515 = vmatmul.f32.gmra.mxu0 %v959
      %v1516 = vpop.f32.mrf.mxu0
      %v1517 = vadd.f32 0.0, %v1516
      %1518 = vmatmul.f32.gmra.mxu0 %v961
      %v1519 = vpop.f32.mrf.mxu0
      %v1520 = vadd.f32 0.0, %v1519
      %1521 = vmatmul.f32.gmra.mxu0 %v963
      %v1522 = vpop.f32.mrf.mxu0
      %v1523 = vadd.f32 0.0, %v1522
      %1524 = vmatmul.f32.gmra.mxu0 %v965
      %v1525 = vpop.f32.mrf.mxu0
      %v1526 = vadd.f32 0.0, %v1525
      %1527 = vmatmul.f32.gmra.mxu0 %v967
      %v1528 = vpop.f32.mrf.mxu0
      %v1529 = vadd.f32 0.0, %v1528
      %1530 = vmatmul.f32.gmra.mxu0 %v969
      %v1531 = vpop.f32.mrf.mxu0
      %v1532 = vadd.f32 0.0, %v1531
      %1533 = vmatmul.f32.gmra.mxu0 %v971
      %v1534 = vpop.f32.mrf.mxu0
      %v1535 = vadd.f32 0.0, %v1534
      %1536 = vmatmul.f32.gmra.mxu0 %v973
      %v1537 = vpop.f32.mrf.mxu0
      %v1538 = vadd.f32 0.0, %v1537
      %1539 = vmatmul.f32.gmra.mxu0 %v975
      %v1540 = vpop.f32.mrf.mxu0
      %v1541 = vadd.f32 0.0, %v1540
      %1542 = vmatmul.f32.gmra.mxu0 %v977
      %v1543 = vpop.f32.mrf.mxu0
      %v1544 = vadd.f32 0.0, %v1543
      %1545 = vmatmul.f32.gmra.mxu0 %v979
      %v1546 = vpop.f32.mrf.mxu0
      %v1547 = vadd.f32 0.0, %v1546
      %1548 = vmatmul.f32.gmra.mxu0 %v981
      %v1549 = vpop.f32.mrf.mxu0
      %v1550 = vadd.f32 0.0, %v1549
      %1551 = vmatmul.f32.gmra.mxu0 %v983
      %v1552 = vpop.f32.mrf.mxu0
      %v1553 = vadd.f32 0.0, %v1552
      %1554 = vmatmul.f32.gmra.mxu0 %v985
      %v1555 = vpop.f32.mrf.mxu0
      %v1556 = vadd.f32 0.0, %v1555
      %1557 = vmatmul.f32.gmra.mxu0 %v987
      %v1558 = vpop.f32.mrf.mxu0
      %v1559 = vadd.f32 0.0, %v1558
      %1560 = vmatmul.f32.gmra.mxu0 %v989
      %v1561 = vpop.f32.mrf.mxu0
      %v1562 = vadd.f32 0.0, %v1561
      %1563 = vmatmul.f32.gmra.mxu0 %v991
      %v1564 = vpop.f32.mrf.mxu0
      %v1565 = vadd.f32 0.0, %v1564
      %1566 = vmatmul.f32.gmra.mxu0 %v993
      %v1567 = vpop.f32.mrf.mxu0
      %v1568 = vadd.f32 0.0, %v1567
      %1569 = vmatmul.f32.gmra.mxu0 %v995
      %v1570 = vpop.f32.mrf.mxu0
      %v1571 = vadd.f32 0.0, %v1570
      %1572 = vmatmul.f32.gmra.mxu0 %v997
      %v1573 = vpop.f32.mrf.mxu0
      %v1574 = vadd.f32 0.0, %v1573
      %1575 = vmatmul.f32.gmra.mxu0 %v999
      %v1576 = vpop.f32.mrf.mxu0
      %v1577 = vadd.f32 0.0, %v1576
      %1578 = vmatmul.f32.gmra.mxu0 %v1001
      %v1579 = vpop.f32.mrf.mxu0
      %v1580 = vadd.f32 0.0, %v1579
      %1581 = vmatmul.f32.gmra.mxu0 %v1003
      %v1582 = vpop.f32.mrf.mxu0
      %v1583 = vadd.f32 0.0, %v1582
      %1584 = vmatmul.f32.gmra.mxu0 %v1005
      %v1585 = vpop.f32.mrf.mxu0
      %v1586 = vadd.f32 0.0, %v1585
      %1587 = vmatmul.f32.gmra.mxu0 %v1007
      %v1588 = vpop.f32.mrf.mxu0
      %v1589 = vadd.f32 0.0, %v1588
      %1590 = vmatmul.f32.gmra.mxu0 %v1009
      %v1591 = vpop.f32.mrf.mxu0
      %v1592 = vadd.f32 0.0, %v1591
      %1593 = vmatmul.f32.gmra.mxu0 %v1011
      %v1594 = vpop.f32.mrf.mxu0
      %v1595 = vadd.f32 0.0, %v1594
      %1596 = vmatmul.f32.gmra.mxu0 %v1013
      %v1597 = vpop.f32.mrf.mxu0
      %v1598 = vadd.f32 0.0, %v1597
      %1599 = vmatmul.f32.gmra.mxu0 %v1486
      %v1600 = vpop.f32.mrf.mxu0
      %v1601 = vadd.f32 0.0, %v1600
      %1602 = vmatmul.f32.gmra.mxu0 %v1488
      %v1603 = vpop.f32.mrf.mxu0
      %v1604 = vadd.f32 0.0, %v1603
      %1605 = vdwg.mxu0
      %v1606 = vadd.f32 %v1447, %v1511
      %v1607 = vadd.f32 %v1448, %v1514
      %v1608 = vadd.f32 %v1449, %v1517
      %v1609 = vadd.f32 %v1450, %v1520
      %v1610 = vadd.f32 %v1451, %v1523
      %v1611 = vadd.f32 %v1452, %v1526
      %v1612 = vadd.f32 %v1453, %v1529
      %v1613 = vadd.f32 %v1454, %v1532
      %v1614 = vadd.f32 %v1455, %v1535
      %v1615 = vadd.f32 %v1456, %v1538
      %v1616 = vadd.f32 %v1457, %v1541
      %v1617 = vadd.f32 %v1458, %v1544
      %v1618 = vadd.f32 %v1459, %v1547
      %v1619 = vadd.f32 %v1460, %v1550
      %v1620 = vadd.f32 %v1461, %v1553
      %v1621 = vadd.f32 %v1462, %v1556
      %v1622 = vadd.f32 %v1463, %v1559
      %v1623 = vadd.f32 %v1464, %v1562
      %v1624 = vadd.f32 %v1465, %v1565
      %v1625 = vadd.f32 %v1466, %v1568
      %v1626 = vadd.f32 %v1467, %v1571
      %v1627 = vadd.f32 %v1468, %v1574
      %v1628 = vadd.f32 %v1469, %v1577
      %v1629 = vadd.f32 %v1470, %v1580
      %v1630 = vadd.f32 %v1471, %v1583
      %v1631 = vadd.f32 %v1472, %v1586
      %v1632 = vadd.f32 %v1473, %v1589
      %v1633 = vadd.f32 %v1474, %v1592
      %v1634 = vadd.f32 %v1475, %v1595
      %v1635 = vadd.f32 %v1476, %v1598
      %v1636 = vadd.f32 %v1477, %v1601
      %v1637 = vadd.f32 %v1478, %v1604
      %s1638 = scalar_lea.vmem %s2, 24
      %v1639 = vld [vmem:[%s1638] sm:$0xf]
      %v1641 = vsel %vm506, %v371, 0
      %v1644 = vsel %vm506, %v372, 0
      %v1647 = vsel %vm571, %v1639, 0
      %1649 = vmatpush.msra.mxu0 0.0
      %1650 = vmatpush.msra.mxu0 0.0
      %1651 = vmatpush.msra.mxu0 0.0
      %1652 = vmatpush.msra.mxu0 0.0
      %1653 = vmatpush.msra.mxu0 0.0
      %1654 = vmatpush.msra.mxu0 0.0
      %1655 = vmatpush.msra.mxu0 0.0
      %1656 = vmatpush.msra.mxu0 0.0
      %1657 = vmatpush.msra.mxu0 0.0
      %1658 = vmatpush.msra.mxu0 0.0
      %1659 = vmatpush.msra.mxu0 0.0
      %1660 = vmatpush.msra.mxu0 0.0
      %1661 = vmatpush.msra.mxu0 0.0
      %1662 = vmatpush.msra.mxu0 0.0
      %1663 = vmatpush.msra.mxu0 0.0
      %1664 = vmatpush.msra.mxu0 %v1647
      %1665 = vmatmul.f32.gmra.mxu0 %v696
      %v1666 = vpop.f32.mrf.mxu0
      %v1667 = vadd.f32 0.0, %v1666
      %1668 = vmatmul.f32.gmra.mxu0 %v698
      %v1669 = vpop.f32.mrf.mxu0
      %v1670 = vadd.f32 0.0, %v1669
      %1671 = vmatmul.f32.gmra.mxu0 %v700
      %v1672 = vpop.f32.mrf.mxu0
      %v1673 = vadd.f32 0.0, %v1672
      %1674 = vmatmul.f32.gmra.mxu0 %v702
      %v1675 = vpop.f32.mrf.mxu0
      %v1676 = vadd.f32 0.0, %v1675
      %1677 = vmatmul.f32.gmra.mxu0 %v704
      %v1678 = vpop.f32.mrf.mxu0
      %v1679 = vadd.f32 0.0, %v1678
      %1680 = vmatmul.f32.gmra.mxu0 %v706
      %v1681 = vpop.f32.mrf.mxu0
      %v1682 = vadd.f32 0.0, %v1681
      %1683 = vmatmul.f32.gmra.mxu0 %v708
      %v1684 = vpop.f32.mrf.mxu0
      %v1685 = vadd.f32 0.0, %v1684
      %1686 = vmatmul.f32.gmra.mxu0 %v710
      %v1687 = vpop.f32.mrf.mxu0
      %v1688 = vadd.f32 0.0, %v1687
      %1689 = vmatmul.f32.gmra.mxu0 %v712
      %v1690 = vpop.f32.mrf.mxu0
      %v1691 = vadd.f32 0.0, %v1690
      %1692 = vmatmul.f32.gmra.mxu0 %v714
      %v1693 = vpop.f32.mrf.mxu0
      %v1694 = vadd.f32 0.0, %v1693
      %1695 = vmatmul.f32.gmra.mxu0 %v716
      %v1696 = vpop.f32.mrf.mxu0
      %v1697 = vadd.f32 0.0, %v1696
      %1698 = vmatmul.f32.gmra.mxu0 %v718
      %v1699 = vpop.f32.mrf.mxu0
      %v1700 = vadd.f32 0.0, %v1699
      %1701 = vmatmul.f32.gmra.mxu0 %v720
      %v1702 = vpop.f32.mrf.mxu0
      %v1703 = vadd.f32 0.0, %v1702
      %1704 = vmatmul.f32.gmra.mxu0 %v722
      %v1705 = vpop.f32.mrf.mxu0
      %v1706 = vadd.f32 0.0, %v1705
      %1707 = vmatmul.f32.gmra.mxu0 %v724
      %v1708 = vpop.f32.mrf.mxu0
      %v1709 = vadd.f32 0.0, %v1708
      %1710 = vmatmul.f32.gmra.mxu0 %v726
      %v1711 = vpop.f32.mrf.mxu0
      %v1712 = vadd.f32 0.0, %v1711
      %1713 = vmatmul.f32.gmra.mxu0 %v728
      %v1714 = vpop.f32.mrf.mxu0
      %v1715 = vadd.f32 0.0, %v1714
      %1716 = vmatmul.f32.gmra.mxu0 %v730
      %v1717 = vpop.f32.mrf.mxu0
      %v1718 = vadd.f32 0.0, %v1717
      %1719 = vmatmul.f32.gmra.mxu0 %v732
      %v1720 = vpop.f32.mrf.mxu0
      %v1721 = vadd.f32 0.0, %v1720
      %1722 = vmatmul.f32.gmra.mxu0 %v734
      %v1723 = vpop.f32.mrf.mxu0
      %v1724 = vadd.f32 0.0, %v1723
      %1725 = vmatmul.f32.gmra.mxu0 %v736
      %v1726 = vpop.f32.mrf.mxu0
      %v1727 = vadd.f32 0.0, %v1726
      %1728 = vmatmul.f32.gmra.mxu0 %v738
      %v1729 = vpop.f32.mrf.mxu0
      %v1730 = vadd.f32 0.0, %v1729
      %1731 = vmatmul.f32.gmra.mxu0 %v740
      %v1732 = vpop.f32.mrf.mxu0
      %v1733 = vadd.f32 0.0, %v1732
      %1734 = vmatmul.f32.gmra.mxu0 %v742
      %v1735 = vpop.f32.mrf.mxu0
      %v1736 = vadd.f32 0.0, %v1735
      %1737 = vmatmul.f32.gmra.mxu0 %v744
      %v1738 = vpop.f32.mrf.mxu0
      %v1739 = vadd.f32 0.0, %v1738
      %1740 = vmatmul.f32.gmra.mxu0 %v746
      %v1741 = vpop.f32.mrf.mxu0
      %v1742 = vadd.f32 0.0, %v1741
      %1743 = vmatmul.f32.gmra.mxu0 %v748
      %v1744 = vpop.f32.mrf.mxu0
      %v1745 = vadd.f32 0.0, %v1744
      %1746 = vmatmul.f32.gmra.mxu0 %v750
      %v1747 = vpop.f32.mrf.mxu0
      %v1748 = vadd.f32 0.0, %v1747
      %1749 = vmatmul.f32.gmra.mxu0 %v1166
      %v1750 = vpop.f32.mrf.mxu0
      %v1751 = vadd.f32 0.0, %v1750
      %1752 = vmatmul.f32.gmra.mxu0 %v1169
      %v1753 = vpop.f32.mrf.mxu0
      %v1754 = vadd.f32 0.0, %v1753
      %1755 = vmatmul.f32.gmra.mxu0 %v1641
      %v1756 = vpop.f32.mrf.mxu0
      %v1757 = vadd.f32 0.0, %v1756
      %1758 = vmatmul.f32.gmra.mxu0 %v1644
      %v1759 = vpop.f32.mrf.mxu0
      %v1760 = vadd.f32 0.0, %v1759
      %1761 = vdwg.mxu0
      %v1762 = vadd.f32 %v1606, %v1667
      %v1763 = vadd.f32 %v1607, %v1670
      %v1764 = vadd.f32 %v1608, %v1673
      %v1765 = vadd.f32 %v1609, %v1676
      %v1766 = vadd.f32 %v1610, %v1679
      %v1767 = vadd.f32 %v1611, %v1682
      %v1768 = vadd.f32 %v1612, %v1685
      %v1769 = vadd.f32 %v1613, %v1688
      %v1770 = vadd.f32 %v1614, %v1691
      %v1771 = vadd.f32 %v1615, %v1694
      %v1772 = vadd.f32 %v1616, %v1697
      %v1773 = vadd.f32 %v1617, %v1700
      %v1774 = vadd.f32 %v1618, %v1703
      %v1775 = vadd.f32 %v1619, %v1706
      %v1776 = vadd.f32 %v1620, %v1709
      %v1777 = vadd.f32 %v1621, %v1712
      %v1778 = vadd.f32 %v1622, %v1715
      %v1779 = vadd.f32 %v1623, %v1718
      %v1780 = vadd.f32 %v1624, %v1721
      %v1781 = vadd.f32 %v1625, %v1724
      %v1782 = vadd.f32 %v1626, %v1727
      %v1783 = vadd.f32 %v1627, %v1730
      %v1784 = vadd.f32 %v1628, %v1733
      %v1785 = vadd.f32 %v1629, %v1736
      %v1786 = vadd.f32 %v1630, %v1739
      %v1787 = vadd.f32 %v1631, %v1742
      %v1788 = vadd.f32 %v1632, %v1745
      %v1789 = vadd.f32 %v1633, %v1748
      %v1790 = vadd.f32 %v1634, %v1751
      %v1791 = vadd.f32 %v1635, %v1754
      %v1792 = vadd.f32 %v1636, %v1757
      %v1793 = vadd.f32 %v1637, %v1760
      %v1795 = vrot.slane %v371, 1
      %v1796 = vrot.slane %v372, 1
      %v1797 = vsel %vm423, %v1795, %v1796
      %v1798 = vrot.slane %v373, 1
      %v1799 = vsel %vm423, %v1796, %v1798
      %s1800 = scalar_lea.vmem %s2, 28
      %v1801 = vld [vmem:[%s1800] sm:$0xf]
      %v1802 = vsel %vm506, %v1797, 0
      %v1804 = vsel %vm506, %v1799, 0
      %v1807 = vsel %vm571, %v1801, 0
      %1809 = vmatpush.msra.mxu0 0.0
      %1810 = vmatpush.msra.mxu0 0.0
      %1811 = vmatpush.msra.mxu0 0.0
      %1812 = vmatpush.msra.mxu0 0.0
      %1813 = vmatpush.msra.mxu0 0.0
      %1814 = vmatpush.msra.mxu0 0.0
      %1815 = vmatpush.msra.mxu0 0.0
      %1816 = vmatpush.msra.mxu0 0.0
      %1817 = vmatpush.msra.mxu0 0.0
      %1818 = vmatpush.msra.mxu0 0.0
      %1819 = vmatpush.msra.mxu0 0.0
      %1820 = vmatpush.msra.mxu0 0.0
      %1821 = vmatpush.msra.mxu0 0.0
      %1822 = vmatpush.msra.mxu0 0.0
      %1823 = vmatpush.msra.mxu0 0.0
      %1824 = vmatpush.msra.mxu0 %v1807
      %1825 = vmatmul.f32.gmra.mxu0 %v515
      %v1826 = vpop.f32.mrf.mxu0
      %v1827 = vadd.f32 0.0, %v1826
      %1828 = vmatmul.f32.gmra.mxu0 %v517
      %v1829 = vpop.f32.mrf.mxu0
      %v1830 = vadd.f32 0.0, %v1829
      %1831 = vmatmul.f32.gmra.mxu0 %v519
      %v1832 = vpop.f32.mrf.mxu0
      %v1833 = vadd.f32 0.0, %v1832
      %1834 = vmatmul.f32.gmra.mxu0 %v521
      %v1835 = vpop.f32.mrf.mxu0
      %v1836 = vadd.f32 0.0, %v1835
      %1837 = vmatmul.f32.gmra.mxu0 %v523
      %v1838 = vpop.f32.mrf.mxu0
      %v1839 = vadd.f32 0.0, %v1838
      %1840 = vmatmul.f32.gmra.mxu0 %v525
      %v1841 = vpop.f32.mrf.mxu0
      %v1842 = vadd.f32 0.0, %v1841
      %1843 = vmatmul.f32.gmra.mxu0 %v527
      %v1844 = vpop.f32.mrf.mxu0
      %v1845 = vadd.f32 0.0, %v1844
      %1846 = vmatmul.f32.gmra.mxu0 %v529
      %v1847 = vpop.f32.mrf.mxu0
      %v1848 = vadd.f32 0.0, %v1847
      %1849 = vmatmul.f32.gmra.mxu0 %v531
      %v1850 = vpop.f32.mrf.mxu0
      %v1851 = vadd.f32 0.0, %v1850
      %1852 = vmatmul.f32.gmra.mxu0 %v533
      %v1853 = vpop.f32.mrf.mxu0
      %v1854 = vadd.f32 0.0, %v1853
      %1855 = vmatmul.f32.gmra.mxu0 %v535
      %v1856 = vpop.f32.mrf.mxu0
      %v1857 = vadd.f32 0.0, %v1856
      %1858 = vmatmul.f32.gmra.mxu0 %v537
      %v1859 = vpop.f32.mrf.mxu0
      %v1860 = vadd.f32 0.0, %v1859
      %1861 = vmatmul.f32.gmra.mxu0 %v539
      %v1862 = vpop.f32.mrf.mxu0
      %v1863 = vadd.f32 0.0, %v1862
      %1864 = vmatmul.f32.gmra.mxu0 %v541
      %v1865 = vpop.f32.mrf.mxu0
      %v1866 = vadd.f32 0.0, %v1865
      %1867 = vmatmul.f32.gmra.mxu0 %v543
      %v1868 = vpop.f32.mrf.mxu0
      %v1869 = vadd.f32 0.0, %v1868
      %1870 = vmatmul.f32.gmra.mxu0 %v545
      %v1871 = vpop.f32.mrf.mxu0
      %v1872 = vadd.f32 0.0, %v1871
      %1873 = vmatmul.f32.gmra.mxu0 %v547
      %v1874 = vpop.f32.mrf.mxu0
      %v1875 = vadd.f32 0.0, %v1874
      %1876 = vmatmul.f32.gmra.mxu0 %v549
      %v1877 = vpop.f32.mrf.mxu0
      %v1878 = vadd.f32 0.0, %v1877
      %1879 = vmatmul.f32.gmra.mxu0 %v551
      %v1880 = vpop.f32.mrf.mxu0
      %v1881 = vadd.f32 0.0, %v1880
      %1882 = vmatmul.f32.gmra.mxu0 %v553
      %v1883 = vpop.f32.mrf.mxu0
      %v1884 = vadd.f32 0.0, %v1883
      %1885 = vmatmul.f32.gmra.mxu0 %v555
      %v1886 = vpop.f32.mrf.mxu0
      %v1887 = vadd.f32 0.0, %v1886
      %1888 = vmatmul.f32.gmra.mxu0 %v557
      %v1889 = vpop.f32.mrf.mxu0
      %v1890 = vadd.f32 0.0, %v1889
      %1891 = vmatmul.f32.gmra.mxu0 %v559
      %v1892 = vpop.f32.mrf.mxu0
      %v1893 = vadd.f32 0.0, %v1892
      %1894 = vmatmul.f32.gmra.mxu0 %v561
      %v1895 = vpop.f32.mrf.mxu0
      %v1896 = vadd.f32 0.0, %v1895
      %1897 = vmatmul.f32.gmra.mxu0 %v563
      %v1898 = vpop.f32.mrf.mxu0
      %v1899 = vadd.f32 0.0, %v1898
      %1900 = vmatmul.f32.gmra.mxu0 %v565
      %v1901 = vpop.f32.mrf.mxu0
      %v1902 = vadd.f32 0.0, %v1901
      %1903 = vmatmul.f32.gmra.mxu0 %v567
      %v1904 = vpop.f32.mrf.mxu0
      %v1905 = vadd.f32 0.0, %v1904
      %1906 = vmatmul.f32.gmra.mxu0 %v569
      %v1907 = vpop.f32.mrf.mxu0
      %v1908 = vadd.f32 0.0, %v1907
      %1909 = vmatmul.f32.gmra.mxu0 %v1327
      %v1910 = vpop.f32.mrf.mxu0
      %v1911 = vadd.f32 0.0, %v1910
      %1912 = vmatmul.f32.gmra.mxu0 %v1329
      %v1913 = vpop.f32.mrf.mxu0
      %v1914 = vadd.f32 0.0, %v1913
      %1915 = vmatmul.f32.gmra.mxu0 %v1802
      %v1916 = vpop.f32.mrf.mxu0
      %v1917 = vadd.f32 0.0, %v1916
      %1918 = vmatmul.f32.gmra.mxu0 %v1804
      %v1919 = vpop.f32.mrf.mxu0
      %v1920 = vadd.f32 0.0, %v1919
      %1921 = vdwg.mxu0
      %v1922 = vadd.f32 %v1762, %v1827
      %v1923 = vadd.f32 %v1763, %v1830
      %v1924 = vadd.f32 %v1764, %v1833
      %v1925 = vadd.f32 %v1765, %v1836
      %v1926 = vadd.f32 %v1766, %v1839
      %v1927 = vadd.f32 %v1767, %v1842
      %v1928 = vadd.f32 %v1768, %v1845
      %v1929 = vadd.f32 %v1769, %v1848
      %v1930 = vadd.f32 %v1770, %v1851
      %v1931 = vadd.f32 %v1771, %v1854
      %v1932 = vadd.f32 %v1772, %v1857
      %v1933 = vadd.f32 %v1773, %v1860
      %v1934 = vadd.f32 %v1774, %v1863
      %v1935 = vadd.f32 %v1775, %v1866
      %v1936 = vadd.f32 %v1776, %v1869
      %v1937 = vadd.f32 %v1777, %v1872
      %v1938 = vadd.f32 %v1778, %v1875
      %v1939 = vadd.f32 %v1779, %v1878
      %v1940 = vadd.f32 %v1780, %v1881
      %v1941 = vadd.f32 %v1781, %v1884
      %v1942 = vadd.f32 %v1782, %v1887
      %v1943 = vadd.f32 %v1783, %v1890
      %v1944 = vadd.f32 %v1784, %v1893
      %v1945 = vadd.f32 %v1785, %v1896
      %v1946 = vadd.f32 %v1786, %v1899
      %v1947 = vadd.f32 %v1787, %v1902
      %v1948 = vadd.f32 %v1788, %v1905
      %v1949 = vadd.f32 %v1789, %v1908
      %v1950 = vadd.f32 %v1790, %v1911
      %v1951 = vadd.f32 %v1791, %v1914
      %v1952 = vadd.f32 %v1792, %v1917
      %v1953 = vadd.f32 %v1793, %v1920
      %v1954 = vrot.slane %v371, 2
      %v1955 = vrot.slane %v372, 2
      %v1956 = vsel %vm868, %v1954, %v1955
      %v1957 = vrot.slane %v373, 2
      %v1958 = vsel %vm868, %v1955, %v1957
      %s1959 = scalar_lea.vmem %s2, 32
      %v1960 = vld [vmem:[%s1959] sm:$0xf]
      %v1961 = vsel %vm506, %v1956, 0
      %v1963 = vsel %vm506, %v1958, 0
      %v1966 = vsel %vm571, %v1960, 0
      %1968 = vmatpush.msra.mxu0 0.0
      %1969 = vmatpush.msra.mxu0 0.0
      %1970 = vmatpush.msra.mxu0 0.0
      %1971 = vmatpush.msra.mxu0 0.0
      %1972 = vmatpush.msra.mxu0 0.0
      %1973 = vmatpush.msra.mxu0 0.0
      %1974 = vmatpush.msra.mxu0 0.0
      %1975 = vmatpush.msra.mxu0 0.0
      %1976 = vmatpush.msra.mxu0 0.0
      %1977 = vmatpush.msra.mxu0 0.0
      %1978 = vmatpush.msra.mxu0 0.0
      %1979 = vmatpush.msra.mxu0 0.0
      %1980 = vmatpush.msra.mxu0 0.0
      %1981 = vmatpush.msra.mxu0 0.0
      %1982 = vmatpush.msra.mxu0 0.0
      %1983 = vmatpush.msra.mxu0 %v1966
      %1984 = vmatmul.f32.gmra.mxu0 %v959
      %v1985 = vpop.f32.mrf.mxu0
      %v1986 = vadd.f32 0.0, %v1985
      %1987 = vmatmul.f32.gmra.mxu0 %v961
      %v1988 = vpop.f32.mrf.mxu0
      %v1989 = vadd.f32 0.0, %v1988
      %1990 = vmatmul.f32.gmra.mxu0 %v963
      %v1991 = vpop.f32.mrf.mxu0
      %v1992 = vadd.f32 0.0, %v1991
      %1993 = vmatmul.f32.gmra.mxu0 %v965
      %v1994 = vpop.f32.mrf.mxu0
      %v1995 = vadd.f32 0.0, %v1994
      %1996 = vmatmul.f32.gmra.mxu0 %v967
      %v1997 = vpop.f32.mrf.mxu0
      %v1998 = vadd.f32 0.0, %v1997
      %1999 = vmatmul.f32.gmra.mxu0 %v969
      %v2000 = vpop.f32.mrf.mxu0
      %v2001 = vadd.f32 0.0, %v2000
      %2002 = vmatmul.f32.gmra.mxu0 %v971
      %v2003 = vpop.f32.mrf.mxu0
      %v2004 = vadd.f32 0.0, %v2003
      %2005 = vmatmul.f32.gmra.mxu0 %v973
      %v2006 = vpop.f32.mrf.mxu0
      %v2007 = vadd.f32 0.0, %v2006
      %2008 = vmatmul.f32.gmra.mxu0 %v975
      %v2009 = vpop.f32.mrf.mxu0
      %v2010 = vadd.f32 0.0, %v2009
      %2011 = vmatmul.f32.gmra.mxu0 %v977
      %v2012 = vpop.f32.mrf.mxu0
      %v2013 = vadd.f32 0.0, %v2012
      %2014 = vmatmul.f32.gmra.mxu0 %v979
      %v2015 = vpop.f32.mrf.mxu0
      %v2016 = vadd.f32 0.0, %v2015
      %2017 = vmatmul.f32.gmra.mxu0 %v981
      %v2018 = vpop.f32.mrf.mxu0
      %v2019 = vadd.f32 0.0, %v2018
      %2020 = vmatmul.f32.gmra.mxu0 %v983
      %v2021 = vpop.f32.mrf.mxu0
      %v2022 = vadd.f32 0.0, %v2021
      %2023 = vmatmul.f32.gmra.mxu0 %v985
      %v2024 = vpop.f32.mrf.mxu0
      %v2025 = vadd.f32 0.0, %v2024
      %2026 = vmatmul.f32.gmra.mxu0 %v987
      %v2027 = vpop.f32.mrf.mxu0
      %v2028 = vadd.f32 0.0, %v2027
      %2029 = vmatmul.f32.gmra.mxu0 %v989
      %v2030 = vpop.f32.mrf.mxu0
      %v2031 = vadd.f32 0.0, %v2030
      %2032 = vmatmul.f32.gmra.mxu0 %v991
      %v2033 = vpop.f32.mrf.mxu0
      %v2034 = vadd.f32 0.0, %v2033
      %2035 = vmatmul.f32.gmra.mxu0 %v993
      %v2036 = vpop.f32.mrf.mxu0
      %v2037 = vadd.f32 0.0, %v2036
      %2038 = vmatmul.f32.gmra.mxu0 %v995
      %v2039 = vpop.f32.mrf.mxu0
      %v2040 = vadd.f32 0.0, %v2039
      %2041 = vmatmul.f32.gmra.mxu0 %v997
      %v2042 = vpop.f32.mrf.mxu0
      %v2043 = vadd.f32 0.0, %v2042
      %2044 = vmatmul.f32.gmra.mxu0 %v999
      %v2045 = vpop.f32.mrf.mxu0
      %v2046 = vadd.f32 0.0, %v2045
      %2047 = vmatmul.f32.gmra.mxu0 %v1001
      %v2048 = vpop.f32.mrf.mxu0
      %v2049 = vadd.f32 0.0, %v2048
      %2050 = vmatmul.f32.gmra.mxu0 %v1003
      %v2051 = vpop.f32.mrf.mxu0
      %v2052 = vadd.f32 0.0, %v2051
      %2053 = vmatmul.f32.gmra.mxu0 %v1005
      %v2054 = vpop.f32.mrf.mxu0
      %v2055 = vadd.f32 0.0, %v2054
      %2056 = vmatmul.f32.gmra.mxu0 %v1007
      %v2057 = vpop.f32.mrf.mxu0
      %v2058 = vadd.f32 0.0, %v2057
      %2059 = vmatmul.f32.gmra.mxu0 %v1009
      %v2060 = vpop.f32.mrf.mxu0
      %v2061 = vadd.f32 0.0, %v2060
      %2062 = vmatmul.f32.gmra.mxu0 %v1011
      %v2063 = vpop.f32.mrf.mxu0
      %v2064 = vadd.f32 0.0, %v2063
      %2065 = vmatmul.f32.gmra.mxu0 %v1013
      %v2066 = vpop.f32.mrf.mxu0
      %v2067 = vadd.f32 0.0, %v2066
      %2068 = vmatmul.f32.gmra.mxu0 %v1486
      %v2069 = vpop.f32.mrf.mxu0
      %v2070 = vadd.f32 0.0, %v2069
      %2071 = vmatmul.f32.gmra.mxu0 %v1488
      %v2072 = vpop.f32.mrf.mxu0
      %v2073 = vadd.f32 0.0, %v2072
      %2074 = vmatmul.f32.gmra.mxu0 %v1961
      %v2075 = vpop.f32.mrf.mxu0
      %v2076 = vadd.f32 0.0, %v2075
      %2077 = vmatmul.f32.gmra.mxu0 %v1963
      %v2078 = vpop.f32.mrf.mxu0
      %v2079 = vadd.f32 0.0, %v2078
      %2080 = vdwg.mxu0
      %v2081 = vadd.f32 %v1922, %v1986
      %v2082 = vadd.f32 %v1923, %v1989
      %v2083 = vadd.f32 %v1924, %v1992
      %v2084 = vadd.f32 %v1925, %v1995
      %v2085 = vadd.f32 %v1926, %v1998
      %v2086 = vadd.f32 %v1927, %v2001
      %v2087 = vadd.f32 %v1928, %v2004
      %v2088 = vadd.f32 %v1929, %v2007
      %v2089 = vadd.f32 %v1930, %v2010
      %v2090 = vadd.f32 %v1931, %v2013
      %v2091 = vadd.f32 %v1932, %v2016
      %v2092 = vadd.f32 %v1933, %v2019
      %v2093 = vadd.f32 %v1934, %v2022
      %v2094 = vadd.f32 %v1935, %v2025
      %v2095 = vadd.f32 %v1936, %v2028
      %v2096 = vadd.f32 %v1937, %v2031
      %v2097 = vadd.f32 %v1938, %v2034
      %v2098 = vadd.f32 %v1939, %v2037
      %v2099 = vadd.f32 %v1940, %v2040
      %v2100 = vadd.f32 %v1941, %v2043
      %v2101 = vadd.f32 %v1942, %v2046
      %v2102 = vadd.f32 %v1943, %v2049
      %v2103 = vadd.f32 %v1944, %v2052
      %v2104 = vadd.f32 %v1945, %v2055
      %v2105 = vadd.f32 %v1946, %v2058
      %v2106 = vadd.f32 %v1947, %v2061
      %v2107 = vadd.f32 %v1948, %v2064
      %v2108 = vadd.f32 %v1949, %v2067
      %v2109 = vadd.f32 %v1950, %v2070
      %v2110 = vadd.f32 %v1951, %v2073
      %v2111 = vadd.f32 %v1952, %v2076
      %v2112 = vadd.f32 %v1953, %v2079
      %v2113 = vld [vmem:[%s3] sm:$0x1]
      %v2115 = vperm.slane %v2113, 0
      %v2117 = vadd.f32 %v2081, %v2115
      %v2118 = vadd.f32 %v2082, %v2115
      %v2119 = vadd.f32 %v2083, %v2115
      %v2120 = vadd.f32 %v2084, %v2115
      %v2121 = vadd.f32 %v2085, %v2115
      %v2122 = vadd.f32 %v2086, %v2115
      %v2123 = vadd.f32 %v2087, %v2115
      %v2124 = vadd.f32 %v2088, %v2115
      %v2125 = vadd.f32 %v2089, %v2115
      %v2126 = vadd.f32 %v2090, %v2115
      %v2127 = vadd.f32 %v2091, %v2115
      %v2128 = vadd.f32 %v2092, %v2115
      %v2129 = vadd.f32 %v2093, %v2115
      %v2130 = vadd.f32 %v2094, %v2115
      %v2131 = vadd.f32 %v2095, %v2115
      %v2132 = vadd.f32 %v2096, %v2115
      %v2133 = vadd.f32 %v2097, %v2115
      %v2134 = vadd.f32 %v2098, %v2115
      %v2135 = vadd.f32 %v2099, %v2115
      %v2136 = vadd.f32 %v2100, %v2115
      %v2137 = vadd.f32 %v2101, %v2115
      %v2138 = vadd.f32 %v2102, %v2115
      %v2139 = vadd.f32 %v2103, %v2115
      %v2140 = vadd.f32 %v2104, %v2115
      %v2141 = vadd.f32 %v2105, %v2115
      %v2142 = vadd.f32 %v2106, %v2115
      %v2143 = vadd.f32 %v2107, %v2115
      %v2144 = vadd.f32 %v2108, %v2115
      %v2145 = vadd.f32 %v2109, %v2115
      %v2146 = vadd.f32 %v2110, %v2115
      %v2147 = vadd.f32 %v2111, %v2115
      %v2148 = vadd.f32 %v2112, %v2115
      %2149 = vst [vmem:[%s318] sm:$0xff] %v2117
      %2150 = vst [vmem:[%s318 + $0x8] sm:$0xff] %v2118
      %2151 = vst [vmem:[%s318 + $0x10] sm:$0xff] %v2119
      %2152 = vst [vmem:[%s318 + $0x18] sm:$0xff] %v2120
      %2153 = vst [vmem:[%s318 + $0x20] sm:$0xff] %v2121
      %2154 = vst [vmem:[%s318 + $0x28] sm:$0xff] %v2122
      %2155 = vst [vmem:[%s318 + $0x30] sm:$0xff] %v2123
      %2156 = vst [vmem:[%s318 + $0x38] sm:$0xff] %v2124
      %2157 = vst [vmem:[%s318 + $0x40] sm:$0xff] %v2125
      %2158 = vst [vmem:[%s318 + $0x48] sm:$0xff] %v2126
      %2159 = vst [vmem:[%s318 + $0x50] sm:$0xff] %v2127
      %2160 = vst [vmem:[%s318 + $0x58] sm:$0xff] %v2128
      %2161 = vst [vmem:[%s318 + $0x60] sm:$0xff] %v2129
      %2162 = vst [vmem:[%s318 + $0x68] sm:$0xff] %v2130
      %2163 = vst [vmem:[%s318 + $0x70] sm:$0xff] %v2131
      %2164 = vst [vmem:[%s318 + $0x78] sm:$0xff] %v2132
      %2165 = vst [vmem:[%s318 + $0x80] sm:$0xff] %v2133
      %2166 = vst [vmem:[%s318 + $0x88] sm:$0xff] %v2134
      %2167 = vst [vmem:[%s318 + $0x90] sm:$0xff] %v2135
      %2168 = vst [vmem:[%s318 + $0x98] sm:$0xff] %v2136
      %2169 = vst [vmem:[%s318 + $0xa0] sm:$0xff] %v2137
      %2170 = vst [vmem:[%s318 + $0xa8] sm:$0xff] %v2138
      %2171 = vst [vmem:[%s318 + $0xb0] sm:$0xff] %v2139
      %2172 = vst [vmem:[%s318 + $0xb8] sm:$0xff] %v2140
      %2173 = vst [vmem:[%s318 + $0xc0] sm:$0xff] %v2141
      %2174 = vst [vmem:[%s318 + $0xc8] sm:$0xff] %v2142
      %2175 = vst [vmem:[%s318 + $0xd0] sm:$0xff] %v2143
      %2176 = vst [vmem:[%s318 + $0xd8] sm:$0xff] %v2144
      %2177 = vst [vmem:[%s318 + $0xe0] sm:$0xff] %v2145
      %2178 = vst [vmem:[%s318 + $0xe8] sm:$0xff] %v2146
      %2179 = vst [vmem:[%s318 + $0xf0] sm:$0xff] %v2147
      %2180 = vst [vmem:[%s318 + $0xf8] sm:$0xff] %v2148
      %s2181 = smul.u32 16, %s20
      %p2182 = scmp.lt.s32.totalorder %s19, 1
      %s2183 = scalar_select %p2182, %s19, 1
      %p2184 = scmp.lt.s32.totalorder %s2181, 15
      %s2185 = scalar_select %p2184, %s2181, 15
      %s2186 = smul.addr %s2185, 2
      %s2187 = smul.addr %s2183, 32
      %s2188 = sadd.s32 %s2186, %s2187
      %s2189 = smul.addr %s2188, 8
      %s2190 = scalar_lea.vmem %s4, %s2189
      // Predicated region
      $region37: #{conv2d_forward.1} parent=35 // pred_check
        %p2191 = pneg %p149
      $region38: #{conv2d_forward.1} parent=35 // pred_check_branch
        %2193 = sbr.rel (%p2191) target = $region40
      $region39: #{conv2d_forward.1} parent=35 // pred_region
        %s2194 = smul.u32 16, %s20
      $region40: #{conv2d_forward.1} parent=35 // pred_fallthru
        _
    $region36: #{conv2d_forward.1} parent=5 // pred_fallthru
      _
    %p2195 = scmp.le.s32.totalorder 2, %s10
    // Predicated region
    $region41: #{conv2d_forward.1} parent=5 // pred_check
      %p2196 = pneg %p2195
    $region42: #{conv2d_forward.1} parent=5 // pred_check_branch
      %2198 = sbr.rel (%p2196) target = $region44
    $region43: #{conv2d_forward.1} parent=5 // pred_region
      %s2199 = ssub.s32 %s10, 2
      // Predicated region
      $region45: #{conv2d_forward.1} parent=43 // pred_check
        %p2200 = pneg %p155
      $region46: #{conv2d_forward.1} parent=43 // pred_check_branch
        %2202 = sbr.rel (%p2200) target = $region48
      $region47: #{conv2d_forward.1} parent=43 // pred_region
        %s2203 = smul.u32 16, %s22
        %p2204 = scmp.lt.s32.totalorder %s21, 1
        %s2205 = scalar_select %p2204, %s21, 1
        %p2206 = scmp.lt.s32.totalorder %s2203, 15
        %s2207 = scalar_select %p2206, %s2203, 15
        %s2208 = smul.addr %s2207, 2
        %s2209 = smul.addr %s2205, 32
        %s2210 = sadd.s32 %s2208, %s2209
        %s2211 = smul.addr %s2210, 8
        %s2212 = scalar_lea.vmem %s4, %s2211
      $region48: #{conv2d_forward.1} parent=43 // pred_fallthru
        _
    $region44: #{conv2d_forward.1} parent=5 // pred_fallthru
      _
  $region6: #{conv2d_forward.1} parent=0 // loop_footer
    %s14 = sadd.s32 1, %s10
  $region7: #{conv2d_forward.1} parent=0 // loop_footer_branch
    %9 = sbr.rel target = $region3
  $region8: #{conv2d_forward.1} parent=0 // loop_exit
    _

</llo_original>
